<compile_context>
chip_gen: v7x
topology: tpu7x:2x2x1
jax: 0.10.0
libtpu: 0.0.40
codegen_flags: <defaults>
</compile_context>

<pallas_src>
import jax
import jax.numpy as jnp
from jax.experimental import pallas as pl
from jax.experimental.pallas import tpu as pltpu

KH = KW = 7
PAD = 3
_LANES = 128
_SUBLANES = 8
_CB = 8          # channels accumulated per chunk (one f32 sublane tile)


def _round_up(v, m):
    return (v + m - 1) // m * m


def _vmem_capacity_bytes():
    try:
        info = pltpu.get_tpu_info()
        cap = getattr(info, "vmem_capacity_bytes", None)
        if cap:
            return int(cap)
    except Exception:
        pass
    return 64 << 20      # conservative fallback (v7x per-core VMEM)


def _make_kernel(*, C, Ct, H, W, L, Wc, W_pad, H_pad, nc, ragged):
    n_full = Ct // _CB
    rem = Ct - n_full * _CB
    unrolled = Ct <= 256            # fully unroll short chunk loops

    def kernel(w_ref, b_ref, x_ref, o_ref, acc_ref, pad_ref):
        # w_ref: SMEM (98,) conv weight, idx = p*49 + dy*7 + dx (p=0 avg, p=1 max)
        # b_ref: SMEM (1,) bias
        # x_ref: VMEM block (1, Ct, L)  -- lane-dense (L = H*W)
        # o_ref: VMEM block (1, H, Wc)  -- lane-dense output
        # acc_ref: VMEM (2, 8, L) running sum / running max partials
        # pad_ref: VMEM (2, H_pad, W_pad) zero-padded avg/max planes
        c = pl.program_id(1)

        # -------- per-batch-item init (megacore-safe: runs on whichever core) ----
        @pl.when(c == 0)
        def _init():
            pad_ref[...] = jnp.zeros_like(pad_ref)
            if nc > 1:
                acc_ref[0] = jnp.zeros((_CB, L), jnp.float32)
                acc_ref[1] = jnp.full((_CB, L), -jnp.inf, jnp.float32)

        if nc > 1:
            s = acc_ref[0]
            m = acc_ref[1]
        else:
            s = jnp.zeros((_CB, L), jnp.float32)
            m = jnp.full((_CB, L), -jnp.inf, jnp.float32)

        # -------- Phase 1: streaming channel reduction (lane-dense, pure VALU) ---
        def accum(s, m, blk, ch0, size):
            if ragged:                     # mask channels past C on the last tile
                ch = ch0 + jax.lax.broadcasted_iota(jnp.int32, (size, 1), 0)
                ok = ch < C
                bs = jnp.where(ok, blk, 0.0)
                bm = jnp.where(ok, blk, -jnp.inf)
            else:
                bs, bm = blk, blk
            if size < _CB:                 # ragged tail chunk (only when Ct == C)
                bs = jnp.concatenate(
                    [bs, jnp.zeros((_CB - size, L), jnp.float32)], axis=0)
                bm = jnp.concatenate(
                    [bm, jnp.full((_CB - size, L), -jnp.inf, jnp.float32)], axis=0)
            return s + bs, jnp.maximum(m, bm)

        if unrolled:
            for start in range(0, Ct, _CB):
                size = min(_CB, Ct - start)
                blk = x_ref[0, start:start + size, :].astype(jnp.float32)
                s, m = accum(s, m, blk, c * Ct + start, size)
        else:
            def body(k, carry):
                ss, mm = carry
                off = pl.multiple_of(k * _CB, _CB)
                blk = x_ref[0, pl.ds(off, _CB), :].astype(jnp.float32)
                return accum(ss, mm, blk, c * Ct + off, _CB)

            s, m = jax.lax.fori_loop(0, n_full, body, (s, m), unroll=4)
            if rem:
                start = n_full * _CB
                blk = x_ref[0, start:start + rem, :].astype(jnp.float32)
                s, m = accum(s, m, blk, c * Ct + start, rem)

        if nc > 1:
            acc_ref[0] = s
            acc_ref[1] = m

        # -------- Phases 2+3: only on the last channel tile ----------------------
        @pl.when(c == nc - 1)
        def _finish():
            # one cross-sublane reduction of the (8, L) partials
            avg_flat = jnp.sum(s, axis=0, keepdims=True) * (1.0 / C)   # (1, L)
            max_flat = jnp.max(m, axis=0, keepdims=True)               # (1, L)

            # unpack flat rows into the zero-padded planes
            # (rows [PAD, PAD+H), cols [0, W); halo stays zero from _init)
            for h in range(H):
                pad_ref[0, PAD + h:PAD + h + 1, 0:W] = avg_flat[:, h * W:(h + 1) * W]
                pad_ref[1, PAD + h:PAD + h + 1, 0:W] = max_flat[:, h * W:(h + 1) * W]

            # 7x7 conv: 14 lane rolls (XLU) + dy-factored VALU MACs
            bias = b_ref[0]
            wv = [w_ref[i] for i in range(2 * KH * KW)]   # hoisted SMEM reads
            acc0 = jnp.full((H, Wc), bias, jnp.float32)
            acc1 = jnp.zeros((H, Wc), jnp.float32)
            t = 0
            for p in range(2):                            # 0 = avg plane, 1 = max
                plane = pad_ref[p]                        # (H_pad, W_pad)
                rolled = []
                for dx in range(KW):
                    shift = (PAD - dx) % W_pad
                    r = plane if shift == 0 else pltpu.roll(plane, shift, 1)
                    rolled.append(r[:, :Wc])              # lane-aligned prefix
                for dy in range(KH):
                    srow = rolled[0] * wv[p * 49 + dy * 7]
                    for dx in range(1, KW):
                        srow = srow + rolled[dx] * wv[p * 49 + dy * 7 + dx]
                    if t % 2 == 0:
                        acc0 = acc0 + srow[dy:dy + H, :]
                    else:
                        acc1 = acc1 + srow[dy:dy + H, :]
                    t += 1
            o_ref[0] = jax.nn.sigmoid(acc0 + acc1).astype(o_ref.dtype)

    return kernel


def spatial_attention(x, weight, bias):
    """x: (N, C, H, W); weight: (1, 2, 7, 7); bias: (1,). Returns (N, 1, H, W) f32."""
    N, C, H, W = x.shape
    L = H * W
    itemsize = jnp.dtype(x.dtype).itemsize
    sub_pack = (8 * 4) // max(1, itemsize)        # sublane rows/tile: f32 8, bf16 16
    L_pad = _round_up(L, _LANES)
    Wc = _round_up(W, _LANES)                     # lane-dense output width
    W_pad = max(_LANES, _round_up(W + 2 * PAD, _LANES))
    H_pad = _round_up(H + 2 * PAD, _SUBLANES)

    # ---- honest VMEM accounting (tiled footprints) + per-generation budget ------
    cap = _vmem_capacity_bytes()
    budget = max(32 << 20, cap - (24 << 20))
    fixed = (2 * _round_up(H, _SUBLANES) * Wc * 4     # double-buffered output block
             + 2 * _CB * L_pad * 4                    # running sum/max scratch
             + 2 * H_pad * W_pad * 4                  # padded conv scratch
             + (4 << 20))                             # headroom (spills, internals)

    def in_block_bytes(ct):
        return 2 * _round_up(ct, sub_pack) * L_pad * itemsize  # double-buffered

    if fixed + in_block_bytes(C) <= budget:
        Ct = C                                        # whole C in a single pass
    else:
        avail = max(budget - fixed, 2 * 16 * L_pad * itemsize)
        Ct = int(avail // (2 * L_pad * itemsize)) // 16 * 16
        Ct = max(16, min(Ct, C))                      # multiple of 16 when tiling
    nc = -(-C // Ct)
    ragged = (C % Ct) != 0

    need = fixed + in_block_bytes(Ct)
    vmem_limit = int(min(cap - (2 << 20), max(need + (8 << 20), 32 << 20)))

    w_flat = weight.reshape(-1).astype(jnp.float32)   # idx = p*49 + dy*7 + dx
    b = bias.reshape(-1).astype(jnp.float32)
    x_flat = x.reshape(N, C, L)                       # free, contiguous reshape

    kernel = _make_kernel(C=C, Ct=Ct, H=H, W=W, L=L, Wc=Wc,
                          W_pad=W_pad, H_pad=H_pad, nc=nc, ragged=ragged)

    out_padded = pl.pallas_call(
        kernel,
        out_shape=jax.ShapeDtypeStruct((N, H, Wc), jnp.float32),
        grid=(N, nc),
        in_specs=[
            pl.BlockSpec(memory_space=pltpu.MemorySpace.SMEM),    # conv weights
            pl.BlockSpec(memory_space=pltpu.MemorySpace.SMEM),    # conv bias
            pl.BlockSpec((1, Ct, L), lambda n, c: (n, c, 0)),     # x (lane-dense)
        ],
        out_specs=pl.BlockSpec((1, H, Wc), lambda n, c: (n, 0, 0)),
        scratch_shapes=[
            pltpu.VMEM((2, _CB, L), jnp.float32),                 # running sum/max
            pltpu.VMEM((2, H_pad, W_pad), jnp.float32),           # padded planes
        ],
        compiler_params=pltpu.CompilerParams(
            # batch axis parallel (megacore); channel-tile axis is a reduction.
            # TODO(synk): for N == 1 on v7x, add a second parallel axis (halo'd H
            # split, or Bt-batched blocks) so both TensorCores are used.
            dimension_semantics=("parallel", "arbitrary"),
            vmem_limit_bytes=vmem_limit),
    )(w_flat, b, x_flat)

    # Lane-padded, channel-squeezed kernel output -> (N, 1, H, W).
    return out_padded[:, None, :, :W]


def _reference(x, weight, bias):
    # pure-JAX reference matching the PyTorch forward
    avg = jnp.mean(x, axis=1, keepdims=True)
    mx = jnp.max(x, axis=1, keepdims=True)
    cat = jnp.concatenate([avg, mx], axis=1)            # (N, 2, H, W)
    out = jax.lax.conv_general_dilated(
        cat, weight, window_strides=(1, 1), padding=((PAD, PAD), (PAD, PAD)),
        dimension_numbers=("NCHW", "OIHW", "NCHW"))
    return jax.nn.sigmoid(out + bias.reshape(1, 1, 1, 1))


if __name__ == "__main__":
    key = jax.random.PRNGKey(0)
    kx, kw, kb = jax.random.split(key, 3)

    N, C, H, W = 2, 4, 16, 16
    x = jax.random.normal(kx, (N, C, H, W), dtype=jnp.float32)

    # Deterministic synthetic conv params (Conv2d(2, 1, 7, padding=3) shapes).
    fan_in = 2 * KH * KW
    bound = 1.0 / jnp.sqrt(fan_in)
    weight = jax.random.uniform(kw, (1, 2, KH, KW), jnp.float32, -bound, bound)
    bias = jax.random.uniform(kb, (1,), jnp.float32, -bound, bound)

    out = spatial_attention(x, weight, bias)
    out = jax.block_until_ready(out)

    ref = _reference(x, weight, bias)
    assert out.shape == (N, 1, H, W)
    assert jnp.allclose(out, ref, rtol=1e-5, atol=1e-5), "mismatch vs reference"

    print("KERNEL_OK")
</pallas_src>

<mosaic_0001>
module attributes {stable_mosaic.version = 11 : i64} {
  func.func @kernel(%arg0: i32, %arg1: i32, %arg2: memref<98xf32, #tpu.memory_space<smem>>, %arg3: memref<1xf32, #tpu.memory_space<smem>>, %arg4: memref<1x4x256xf32, #tpu.memory_space<vmem>>, %arg5: memref<1x16x128xf32, #tpu.memory_space<vmem>>, %arg6: memref<2x8x256xf32, #tpu.memory_space<vmem>>, %arg7: memref<2x24x128xf32, #tpu.memory_space<vmem>>) attributes {dimension_semantics = [#tpu.dimension_semantics<parallel>, #tpu.dimension_semantics<arbitrary>], iteration_bounds = array<i64: 2, 1>, scalar_prefetch = 0 : i64, scratch_operands = 2 : i64, tpu.core_type = #tpu.core_type<tc>, window_params = [{transform_indices = @transform_0, window_bounds = array<i64: 98>}, {transform_indices = @transform_1, window_bounds = array<i64: 1>}, {transform_indices = @transform_2, window_bounds = array<i64: 1, 4, 256>}, {transform_indices = @transform_3, window_bounds = array<i64: 1, 16, 128>}]} {
    %c0_i32 = arith.constant 0 : i32
    %0 = arith.cmpi eq, %arg1, %c0_i32 : i32
    %1 = arith.extui %0 : i1 to i32
    %c0_i32_0 = arith.constant 0 : i32
    %2 = arith.cmpi ne, %1, %c0_i32_0 : i32
    scf.if %2 {
      %cst_8 = arith.constant 0.000000e+00 : f32
      %16 = vector.broadcast %cst_8 : f32 to vector<2x24x128xf32>
      %c0_9 = arith.constant 0 : index
      %c0_10 = arith.constant 0 : index
      %c0_11 = arith.constant 0 : index
      %17 = vector.load %arg7[%c0_9, %c0_10, %c0_11] : memref<2x24x128xf32, #tpu.memory_space<vmem>>, vector<2x24x128xf32>
      tpu.vector_store %arg7[%c0_9, %c0_10, %c0_11], %16 {strides = array<i32>} : memref<2x24x128xf32, #tpu.memory_space<vmem>>, vector<2x24x128xf32>,
    } else {
    }
    %cst = arith.constant 0.000000e+00 : f32
    %3 = vector.broadcast %cst : f32 to vector<8x256xf32>
    %cst_1 = arith.constant 0xFF800000 : f32
    %4 = vector.broadcast %cst_1 : f32 to vector<8x256xf32>
    %c0 = arith.constant 0 : index
    %c0_2 = arith.constant 0 : index
    %c0_3 = arith.constant 0 : index
    %5 = vector.load %arg4[%c0, %c0_2, %c0_3] : memref<1x4x256xf32, #tpu.memory_space<vmem>>, vector<1x4x256xf32>
    %6 = vector.shape_cast %5 : vector<1x4x256xf32> to vector<4x256xf32>
    %cst_4 = arith.constant 0.000000e+00 : f32
    %7 = vector.broadcast %cst_4 : f32 to vector<4x256xf32>
    %8 = tpu.concatenate %6, %7 in 0 : vector<4x256xf32>, vector<4x256xf32> -> vector<8x256xf32>
    %cst_5 = arith.constant 0xFF800000 : f32
    %9 = vector.broadcast %cst_5 : f32 to vector<4x256xf32>
    %10 = tpu.concatenate %6, %9 in 0 : vector<4x256xf32>, vector<4x256xf32> -> vector<8x256xf32>
    %11 = arith.addf %3, %8 : vector<8x256xf32>
    %12 = arith.maximumf %4, %10 : vector<8x256xf32>
    %c0_i32_6 = arith.constant 0 : i32
    %13 = arith.cmpi eq, %arg1, %c0_i32_6 : i32
    %14 = arith.extui %13 : i1 to i32
    %c0_i32_7 = arith.constant 0 : i32
    %15 = arith.cmpi ne, %14, %c0_i32_7 : i32
    scf.if %15 {
      %cst_8 = arith.constant dense<0.000000e+00> : vector<256xf32>
      %16 = vector.multi_reduction <add>, %11, %cst_8 [0] : vector<8x256xf32> to vector<256xf32>
      %17 = vector.shape_cast %16 : vector<256xf32> to vector<1x256xf32>
      %cst_9 = arith.constant 2.500000e-01 : f32
      %18 = vector.broadcast %cst_9 : f32 to vector<1x256xf32>
      %19 = arith.mulf %17, %18 : vector<1x256xf32>
      %cst_10 = arith.constant dense<0xFF800000> : vector<256xf32>
      %20 = vector.multi_reduction <maximumf>, %12, %cst_10 [0] : vector<8x256xf32> to vector<256xf32>
      %21 = vector.shape_cast %20 : vector<256xf32> to vector<1x256xf32>
      %22 = vector.extract_strided_slice %19 {offsets = [0, 0], sizes = [1, 16], strides = [1, 1]} : vector<1x256xf32> to vector<1x16xf32>
      %c0_11 = arith.constant 0 : index
      %c3 = arith.constant 3 : index
      %c0_12 = arith.constant 0 : index
      %23 = vector.load %arg7[%c0_11, %c3, %c0_12] : memref<2x24x128xf32, #tpu.memory_space<vmem>>, vector<1x1x16xf32>
      %24 = vector.shape_cast %23 : vector<1x1x16xf32> to vector<1x16xf32>
      %25 = vector.shape_cast %22 : vector<1x16xf32> to vector<1x1x16xf32>
      tpu.vector_store %arg7[%c0_11, %c3, %c0_12], %25 {strides = array<i32>} : memref<2x24x128xf32, #tpu.memory_space<vmem>>, vector<1x1x16xf32>,
      %26 = vector.extract_strided_slice %21 {offsets = [0, 0], sizes = [1, 16], strides = [1, 1]} : vector<1x256xf32> to vector<1x16xf32>
      %c1 = arith.constant 1 : index
      %c3_13 = arith.constant 3 : index
      %c0_14 = arith.constant 0 : index
      %27 = vector.load %arg7[%c1, %c3_13, %c0_14] : memref<2x24x128xf32, #tpu.memory_space<vmem>>, vector<1x1x16xf32>
      %28 = vector.shape_cast %27 : vector<1x1x16xf32> to vector<1x16xf32>
      %29 = vector.shape_cast %26 : vector<1x16xf32> to vector<1x1x16xf32>
      tpu.vector_store %arg7[%c1, %c3_13, %c0_14], %29 {strides = array<i32>} : memref<2x24x128xf32, #tpu.memory_space<vmem>>, vector<1x1x16xf32>,
      %30 = vector.extract_strided_slice %19 {offsets = [0, 16], sizes = [1, 16], strides = [1, 1]} : vector<1x256xf32> to vector<1x16xf32>
      %c0_15 = arith.constant 0 : index
      %c4 = arith.constant 4 : index
      %c0_16 = arith.constant 0 : index
      %31 = vector.load %arg7[%c0_15, %c4, %c0_16] : memref<2x24x128xf32, #tpu.memory_space<vmem>>, vector<1x1x16xf32>
      %32 = vector.shape_cast %31 : vector<1x1x16xf32> to vector<1x16xf32>
      %33 = vector.shape_cast %30 : vector<1x16xf32> to vector<1x1x16xf32>
      tpu.vector_store %arg7[%c0_15, %c4, %c0_16], %33 {strides = array<i32>} : memref<2x24x128xf32, #tpu.memory_space<vmem>>, vector<1x1x16xf32>,
      %34 = vector.extract_strided_slice %21 {offsets = [0, 16], sizes = [1, 16], strides = [1, 1]} : vector<1x256xf32> to vector<1x16xf32>
      %c1_17 = arith.constant 1 : index
      %c4_18 = arith.constant 4 : index
      %c0_19 = arith.constant 0 : index
      %35 = vector.load %arg7[%c1_17, %c4_18, %c0_19] : memref<2x24x128xf32, #tpu.memory_space<vmem>>, vector<1x1x16xf32>
      %36 = vector.shape_cast %35 : vector<1x1x16xf32> to vector<1x16xf32>
      %37 = vector.shape_cast %34 : vector<1x16xf32> to vector<1x1x16xf32>
      tpu.vector_store %arg7[%c1_17, %c4_18, %c0_19], %37 {strides = array<i32>} : memref<2x24x128xf32, #tpu.memory_space<vmem>>, vector<1x1x16xf32>,
      %38 = vector.extract_strided_slice %19 {offsets = [0, 32], sizes = [1, 16], strides = [1, 1]} : vector<1x256xf32> to vector<1x16xf32>
      %c0_20 = arith.constant 0 : index
      %c5 = arith.constant 5 : index
      %c0_21 = arith.constant 0 : index
      %39 = vector.load %arg7[%c0_20, %c5, %c0_21] : memref<2x24x128xf32, #tpu.memory_space<vmem>>, vector<1x1x16xf32>
      %40 = vector.shape_cast %39 : vector<1x1x16xf32> to vector<1x16xf32>
      %41 = vector.shape_cast %38 : vector<1x16xf32> to vector<1x1x16xf32>
      tpu.vector_store %arg7[%c0_20, %c5, %c0_21], %41 {strides = array<i32>} : memref<2x24x128xf32, #tpu.memory_space<vmem>>, vector<1x1x16xf32>,
      %42 = vector.extract_strided_slice %21 {offsets = [0, 32], sizes = [1, 16], strides = [1, 1]} : vector<1x256xf32> to vector<1x16xf32>
      %c1_22 = arith.constant 1 : index
      %c5_23 = arith.constant 5 : index
      %c0_24 = arith.constant 0 : index
      %43 = vector.load %arg7[%c1_22, %c5_23, %c0_24] : memref<2x24x128xf32, #tpu.memory_space<vmem>>, vector<1x1x16xf32>
      %44 = vector.shape_cast %43 : vector<1x1x16xf32> to vector<1x16xf32>
      %45 = vector.shape_cast %42 : vector<1x16xf32> to vector<1x1x16xf32>
      tpu.vector_store %arg7[%c1_22, %c5_23, %c0_24], %45 {strides = array<i32>} : memref<2x24x128xf32, #tpu.memory_space<vmem>>, vector<1x1x16xf32>,
      %46 = vector.extract_strided_slice %19 {offsets = [0, 48], sizes = [1, 16], strides = [1, 1]} : vector<1x256xf32> to vector<1x16xf32>
      %c0_25 = arith.constant 0 : index
      %c6 = arith.constant 6 : index
      %c0_26 = arith.constant 0 : index
      %47 = vector.load %arg7[%c0_25, %c6, %c0_26] : memref<2x24x128xf32, #tpu.memory_space<vmem>>, vector<1x1x16xf32>
      %48 = vector.shape_cast %47 : vector<1x1x16xf32> to vector<1x16xf32>
      %49 = vector.shape_cast %46 : vector<1x16xf32> to vector<1x1x16xf32>
      tpu.vector_store %arg7[%c0_25, %c6, %c0_26], %49 {strides = array<i32>} : memref<2x24x128xf32, #tpu.memory_space<vmem>>, vector<1x1x16xf32>,
      %50 = vector.extract_strided_slice %21 {offsets = [0, 48], sizes = [1, 16], strides = [1, 1]} : vector<1x256xf32> to vector<1x16xf32>
      %c1_27 = arith.constant 1 : index
      %c6_28 = arith.constant 6 : index
      %c0_29 = arith.constant 0 : index
      %51 = vector.load %arg7[%c1_27, %c6_28, %c0_29] : memref<2x24x128xf32, #tpu.memory_space<vmem>>, vector<1x1x16xf32>
      %52 = vector.shape_cast %51 : vector<1x1x16xf32> to vector<1x16xf32>
      %53 = vector.shape_cast %50 : vector<1x16xf32> to vector<1x1x16xf32>
      tpu.vector_store %arg7[%c1_27, %c6_28, %c0_29], %53 {strides = array<i32>} : memref<2x24x128xf32, #tpu.memory_space<vmem>>, vector<1x1x16xf32>,
      %54 = vector.extract_strided_slice %19 {offsets = [0, 64], sizes = [1, 16], strides = [1, 1]} : vector<1x256xf32> to vector<1x16xf32>
      %c0_30 = arith.constant 0 : index
      %c7 = arith.constant 7 : index
      %c0_31 = arith.constant 0 : index
      %55 = vector.load %arg7[%c0_30, %c7, %c0_31] : memref<2x24x128xf32, #tpu.memory_space<vmem>>, vector<1x1x16xf32>
      %56 = vector.shape_cast %55 : vector<1x1x16xf32> to vector<1x16xf32>
      %57 = vector.shape_cast %54 : vector<1x16xf32> to vector<1x1x16xf32>
      tpu.vector_store %arg7[%c0_30, %c7, %c0_31], %57 {strides = array<i32>} : memref<2x24x128xf32, #tpu.memory_space<vmem>>, vector<1x1x16xf32>,
      %58 = vector.extract_strided_slice %21 {offsets = [0, 64], sizes = [1, 16], strides = [1, 1]} : vector<1x256xf32> to vector<1x16xf32>
      %c1_32 = arith.constant 1 : index
      %c7_33 = arith.constant 7 : index
      %c0_34 = arith.constant 0 : index
      %59 = vector.load %arg7[%c1_32, %c7_33, %c0_34] : memref<2x24x128xf32, #tpu.memory_space<vmem>>, vector<1x1x16xf32>
      %60 = vector.shape_cast %59 : vector<1x1x16xf32> to vector<1x16xf32>
      %61 = vector.shape_cast %58 : vector<1x16xf32> to vector<1x1x16xf32>
      tpu.vector_store %arg7[%c1_32, %c7_33, %c0_34], %61 {strides = array<i32>} : memref<2x24x128xf32, #tpu.memory_space<vmem>>, vector<1x1x16xf32>,
      %62 = vector.extract_strided_slice %19 {offsets = [0, 80], sizes = [1, 16], strides = [1, 1]} : vector<1x256xf32> to vector<1x16xf32>
      %c0_35 = arith.constant 0 : index
      %c8 = arith.constant 8 : index
      %c0_36 = arith.constant 0 : index
      %63 = vector.load %arg7[%c0_35, %c8, %c0_36] : memref<2x24x128xf32, #tpu.memory_space<vmem>>, vector<1x1x16xf32>
      %64 = vector.shape_cast %63 : vector<1x1x16xf32> to vector<1x16xf32>
      %65 = vector.shape_cast %62 : vector<1x16xf32> to vector<1x1x16xf32>
      tpu.vector_store %arg7[%c0_35, %c8, %c0_36], %65 {strides = array<i32>} : memref<2x24x128xf32, #tpu.memory_space<vmem>>, vector<1x1x16xf32>,
      %66 = vector.extract_strided_slice %21 {offsets = [0, 80], sizes = [1, 16], strides = [1, 1]} : vector<1x256xf32> to vector<1x16xf32>
      %c1_37 = arith.constant 1 : index
      %c8_38 = arith.constant 8 : index
      %c0_39 = arith.constant 0 : index
      %67 = vector.load %arg7[%c1_37, %c8_38, %c0_39] : memref<2x24x128xf32, #tpu.memory_space<vmem>>, vector<1x1x16xf32>
      %68 = vector.shape_cast %67 : vector<1x1x16xf32> to vector<1x16xf32>
      %69 = vector.shape_cast %66 : vector<1x16xf32> to vector<1x1x16xf32>
      tpu.vector_store %arg7[%c1_37, %c8_38, %c0_39], %69 {strides = array<i32>} : memref<2x24x128xf32, #tpu.memory_space<vmem>>, vector<1x1x16xf32>,
      %70 = vector.extract_strided_slice %19 {offsets = [0, 96], sizes = [1, 16], strides = [1, 1]} : vector<1x256xf32> to vector<1x16xf32>
      %c0_40 = arith.constant 0 : index
      %c9 = arith.constant 9 : index
      %c0_41 = arith.constant 0 : index
      %71 = vector.load %arg7[%c0_40, %c9, %c0_41] : memref<2x24x128xf32, #tpu.memory_space<vmem>>, vector<1x1x16xf32>
      %72 = vector.shape_cast %71 : vector<1x1x16xf32> to vector<1x16xf32>
      %73 = vector.shape_cast %70 : vector<1x16xf32> to vector<1x1x16xf32>
      tpu.vector_store %arg7[%c0_40, %c9, %c0_41], %73 {strides = array<i32>} : memref<2x24x128xf32, #tpu.memory_space<vmem>>, vector<1x1x16xf32>,
      %74 = vector.extract_strided_slice %21 {offsets = [0, 96], sizes = [1, 16], strides = [1, 1]} : vector<1x256xf32> to vector<1x16xf32>
      %c1_42 = arith.constant 1 : index
      %c9_43 = arith.constant 9 : index
      %c0_44 = arith.constant 0 : index
      %75 = vector.load %arg7[%c1_42, %c9_43, %c0_44] : memref<2x24x128xf32, #tpu.memory_space<vmem>>, vector<1x1x16xf32>
      %76 = vector.shape_cast %75 : vector<1x1x16xf32> to vector<1x16xf32>
      %77 = vector.shape_cast %74 : vector<1x16xf32> to vector<1x1x16xf32>
      tpu.vector_store %arg7[%c1_42, %c9_43, %c0_44], %77 {strides = array<i32>} : memref<2x24x128xf32, #tpu.memory_space<vmem>>, vector<1x1x16xf32>,
      %78 = vector.extract_strided_slice %19 {offsets = [0, 112], sizes = [1, 16], strides = [1, 1]} : vector<1x256xf32> to vector<1x16xf32>
      %c0_45 = arith.constant 0 : index
      %c10 = arith.constant 10 : index
      %c0_46 = arith.constant 0 : index
      %79 = vector.load %arg7[%c0_45, %c10, %c0_46] : memref<2x24x128xf32, #tpu.memory_space<vmem>>, vector<1x1x16xf32>
      %80 = vector.shape_cast %79 : vector<1x1x16xf32> to vector<1x16xf32>
      %81 = vector.shape_cast %78 : vector<1x16xf32> to vector<1x1x16xf32>
      tpu.vector_store %arg7[%c0_45, %c10, %c0_46], %81 {strides = array<i32>} : memref<2x24x128xf32, #tpu.memory_space<vmem>>, vector<1x1x16xf32>,
      %82 = vector.extract_strided_slice %21 {offsets = [0, 112], sizes = [1, 16], strides = [1, 1]} : vector<1x256xf32> to vector<1x16xf32>
      %c1_47 = arith.constant 1 : index
      %c10_48 = arith.constant 10 : index
      %c0_49 = arith.constant 0 : index
      %83 = vector.load %arg7[%c1_47, %c10_48, %c0_49] : memref<2x24x128xf32, #tpu.memory_space<vmem>>, vector<1x1x16xf32>
      %84 = vector.shape_cast %83 : vector<1x1x16xf32> to vector<1x16xf32>
      %85 = vector.shape_cast %82 : vector<1x16xf32> to vector<1x1x16xf32>
      tpu.vector_store %arg7[%c1_47, %c10_48, %c0_49], %85 {strides = array<i32>} : memref<2x24x128xf32, #tpu.memory_space<vmem>>, vector<1x1x16xf32>,
      %86 = vector.extract_strided_slice %19 {offsets = [0, 128], sizes = [1, 16], strides = [1, 1]} : vector<1x256xf32> to vector<1x16xf32>
      %c0_50 = arith.constant 0 : index
      %c11 = arith.constant 11 : index
      %c0_51 = arith.constant 0 : index
      %87 = vector.load %arg7[%c0_50, %c11, %c0_51] : memref<2x24x128xf32, #tpu.memory_space<vmem>>, vector<1x1x16xf32>
      %88 = vector.shape_cast %87 : vector<1x1x16xf32> to vector<1x16xf32>
      %89 = vector.shape_cast %86 : vector<1x16xf32> to vector<1x1x16xf32>
      tpu.vector_store %arg7[%c0_50, %c11, %c0_51], %89 {strides = array<i32>} : memref<2x24x128xf32, #tpu.memory_space<vmem>>, vector<1x1x16xf32>,
      %90 = vector.extract_strided_slice %21 {offsets = [0, 128], sizes = [1, 16], strides = [1, 1]} : vector<1x256xf32> to vector<1x16xf32>
      %c1_52 = arith.constant 1 : index
      %c11_53 = arith.constant 11 : index
      %c0_54 = arith.constant 0 : index
      %91 = vector.load %arg7[%c1_52, %c11_53, %c0_54] : memref<2x24x128xf32, #tpu.memory_space<vmem>>, vector<1x1x16xf32>
      %92 = vector.shape_cast %91 : vector<1x1x16xf32> to vector<1x16xf32>
      %93 = vector.shape_cast %90 : vector<1x16xf32> to vector<1x1x16xf32>
      tpu.vector_store %arg7[%c1_52, %c11_53, %c0_54], %93 {strides = array<i32>} : memref<2x24x128xf32, #tpu.memory_space<vmem>>, vector<1x1x16xf32>,
      %94 = vector.extract_strided_slice %19 {offsets = [0, 144], sizes = [1, 16], strides = [1, 1]} : vector<1x256xf32> to vector<1x16xf32>
      %c0_55 = arith.constant 0 : index
      %c12 = arith.constant 12 : index
      %c0_56 = arith.constant 0 : index
      %95 = vector.load %arg7[%c0_55, %c12, %c0_56] : memref<2x24x128xf32, #tpu.memory_space<vmem>>, vector<1x1x16xf32>
      %96 = vector.shape_cast %95 : vector<1x1x16xf32> to vector<1x16xf32>
      %97 = vector.shape_cast %94 : vector<1x16xf32> to vector<1x1x16xf32>
      tpu.vector_store %arg7[%c0_55, %c12, %c0_56], %97 {strides = array<i32>} : memref<2x24x128xf32, #tpu.memory_space<vmem>>, vector<1x1x16xf32>,
      %98 = vector.extract_strided_slice %21 {offsets = [0, 144], sizes = [1, 16], strides = [1, 1]} : vector<1x256xf32> to vector<1x16xf32>
      %c1_57 = arith.constant 1 : index
      %c12_58 = arith.constant 12 : index
      %c0_59 = arith.constant 0 : index
      %99 = vector.load %arg7[%c1_57, %c12_58, %c0_59] : memref<2x24x128xf32, #tpu.memory_space<vmem>>, vector<1x1x16xf32>
      %100 = vector.shape_cast %99 : vector<1x1x16xf32> to vector<1x16xf32>
      %101 = vector.shape_cast %98 : vector<1x16xf32> to vector<1x1x16xf32>
      tpu.vector_store %arg7[%c1_57, %c12_58, %c0_59], %101 {strides = array<i32>} : memref<2x24x128xf32, #tpu.memory_space<vmem>>, vector<1x1x16xf32>,
      %102 = vector.extract_strided_slice %19 {offsets = [0, 160], sizes = [1, 16], strides = [1, 1]} : vector<1x256xf32> to vector<1x16xf32>
      %c0_60 = arith.constant 0 : index
      %c13 = arith.constant 13 : index
      %c0_61 = arith.constant 0 : index
      %103 = vector.load %arg7[%c0_60, %c13, %c0_61] : memref<2x24x128xf32, #tpu.memory_space<vmem>>, vector<1x1x16xf32>
      %104 = vector.shape_cast %103 : vector<1x1x16xf32> to vector<1x16xf32>
      %105 = vector.shape_cast %102 : vector<1x16xf32> to vector<1x1x16xf32>
      tpu.vector_store %arg7[%c0_60, %c13, %c0_61], %105 {strides = array<i32>} : memref<2x24x128xf32, #tpu.memory_space<vmem>>, vector<1x1x16xf32>,
      %106 = vector.extract_strided_slice %21 {offsets = [0, 160], sizes = [1, 16], strides = [1, 1]} : vector<1x256xf32> to vector<1x16xf32>
      %c1_62 = arith.constant 1 : index
      %c13_63 = arith.constant 13 : index
      %c0_64 = arith.constant 0 : index
      %107 = vector.load %arg7[%c1_62, %c13_63, %c0_64] : memref<2x24x128xf32, #tpu.memory_space<vmem>>, vector<1x1x16xf32>
      %108 = vector.shape_cast %107 : vector<1x1x16xf32> to vector<1x16xf32>
      %109 = vector.shape_cast %106 : vector<1x16xf32> to vector<1x1x16xf32>
      tpu.vector_store %arg7[%c1_62, %c13_63, %c0_64], %109 {strides = array<i32>} : memref<2x24x128xf32, #tpu.memory_space<vmem>>, vector<1x1x16xf32>,
      %110 = vector.extract_strided_slice %19 {offsets = [0, 176], sizes = [1, 16], strides = [1, 1]} : vector<1x256xf32> to vector<1x16xf32>
      %c0_65 = arith.constant 0 : index
      %c14 = arith.constant 14 : index
      %c0_66 = arith.constant 0 : index
      %111 = vector.load %arg7[%c0_65, %c14, %c0_66] : memref<2x24x128xf32, #tpu.memory_space<vmem>>, vector<1x1x16xf32>
      %112 = vector.shape_cast %111 : vector<1x1x16xf32> to vector<1x16xf32>
      %113 = vector.shape_cast %110 : vector<1x16xf32> to vector<1x1x16xf32>
      tpu.vector_store %arg7[%c0_65, %c14, %c0_66], %113 {strides = array<i32>} : memref<2x24x128xf32, #tpu.memory_space<vmem>>, vector<1x1x16xf32>,
      %114 = vector.extract_strided_slice %21 {offsets = [0, 176], sizes = [1, 16], strides = [1, 1]} : vector<1x256xf32> to vector<1x16xf32>
      %c1_67 = arith.constant 1 : index
      %c14_68 = arith.constant 14 : index
      %c0_69 = arith.constant 0 : index
      %115 = vector.load %arg7[%c1_67, %c14_68, %c0_69] : memref<2x24x128xf32, #tpu.memory_space<vmem>>, vector<1x1x16xf32>
      %116 = vector.shape_cast %115 : vector<1x1x16xf32> to vector<1x16xf32>
      %117 = vector.shape_cast %114 : vector<1x16xf32> to vector<1x1x16xf32>
      tpu.vector_store %arg7[%c1_67, %c14_68, %c0_69], %117 {strides = array<i32>} : memref<2x24x128xf32, #tpu.memory_space<vmem>>, vector<1x1x16xf32>,
      %118 = vector.extract_strided_slice %19 {offsets = [0, 192], sizes = [1, 16], strides = [1, 1]} : vector<1x256xf32> to vector<1x16xf32>
      %c0_70 = arith.constant 0 : index
      %c15 = arith.constant 15 : index
      %c0_71 = arith.constant 0 : index
      %119 = vector.load %arg7[%c0_70, %c15, %c0_71] : memref<2x24x128xf32, #tpu.memory_space<vmem>>, vector<1x1x16xf32>
      %120 = vector.shape_cast %119 : vector<1x1x16xf32> to vector<1x16xf32>
      %121 = vector.shape_cast %118 : vector<1x16xf32> to vector<1x1x16xf32>
      tpu.vector_store %arg7[%c0_70, %c15, %c0_71], %121 {strides = array<i32>} : memref<2x24x128xf32, #tpu.memory_space<vmem>>, vector<1x1x16xf32>,
      %122 = vector.extract_strided_slice %21 {offsets = [0, 192], sizes = [1, 16], strides = [1, 1]} : vector<1x256xf32> to vector<1x16xf32>
      %c1_72 = arith.constant 1 : index
      %c15_73 = arith.constant 15 : index
      %c0_74 = arith.constant 0 : index
      %123 = vector.load %arg7[%c1_72, %c15_73, %c0_74] : memref<2x24x128xf32, #tpu.memory_space<vmem>>, vector<1x1x16xf32>
      %124 = vector.shape_cast %123 : vector<1x1x16xf32> to vector<1x16xf32>
      %125 = vector.shape_cast %122 : vector<1x16xf32> to vector<1x1x16xf32>
      tpu.vector_store %arg7[%c1_72, %c15_73, %c0_74], %125 {strides = array<i32>} : memref<2x24x128xf32, #tpu.memory_space<vmem>>, vector<1x1x16xf32>,
      %126 = vector.extract_strided_slice %19 {offsets = [0, 208], sizes = [1, 16], strides = [1, 1]} : vector<1x256xf32> to vector<1x16xf32>
      %c0_75 = arith.constant 0 : index
      %c16 = arith.constant 16 : index
      %c0_76 = arith.constant 0 : index
      %127 = vector.load %arg7[%c0_75, %c16, %c0_76] : memref<2x24x128xf32, #tpu.memory_space<vmem>>, vector<1x1x16xf32>
      %128 = vector.shape_cast %127 : vector<1x1x16xf32> to vector<1x16xf32>
      %129 = vector.shape_cast %126 : vector<1x16xf32> to vector<1x1x16xf32>
      tpu.vector_store %arg7[%c0_75, %c16, %c0_76], %129 {strides = array<i32>} : memref<2x24x128xf32, #tpu.memory_space<vmem>>, vector<1x1x16xf32>,
      %130 = vector.extract_strided_slice %21 {offsets = [0, 208], sizes = [1, 16], strides = [1, 1]} : vector<1x256xf32> to vector<1x16xf32>
      %c1_77 = arith.constant 1 : index
      %c16_78 = arith.constant 16 : index
      %c0_79 = arith.constant 0 : index
      %131 = vector.load %arg7[%c1_77, %c16_78, %c0_79] : memref<2x24x128xf32, #tpu.memory_space<vmem>>, vector<1x1x16xf32>
      %132 = vector.shape_cast %131 : vector<1x1x16xf32> to vector<1x16xf32>
      %133 = vector.shape_cast %130 : vector<1x16xf32> to vector<1x1x16xf32>
      tpu.vector_store %arg7[%c1_77, %c16_78, %c0_79], %133 {strides = array<i32>} : memref<2x24x128xf32, #tpu.memory_space<vmem>>, vector<1x1x16xf32>,
      %134 = vector.extract_strided_slice %19 {offsets = [0, 224], sizes = [1, 16], strides = [1, 1]} : vector<1x256xf32> to vector<1x16xf32>
      %c0_80 = arith.constant 0 : index
      %c17 = arith.constant 17 : index
      %c0_81 = arith.constant 0 : index
      %135 = vector.load %arg7[%c0_80, %c17, %c0_81] : memref<2x24x128xf32, #tpu.memory_space<vmem>>, vector<1x1x16xf32>
      %136 = vector.shape_cast %135 : vector<1x1x16xf32> to vector<1x16xf32>
      %137 = vector.shape_cast %134 : vector<1x16xf32> to vector<1x1x16xf32>
      tpu.vector_store %arg7[%c0_80, %c17, %c0_81], %137 {strides = array<i32>} : memref<2x24x128xf32, #tpu.memory_space<vmem>>, vector<1x1x16xf32>,
      %138 = vector.extract_strided_slice %21 {offsets = [0, 224], sizes = [1, 16], strides = [1, 1]} : vector<1x256xf32> to vector<1x16xf32>
      %c1_82 = arith.constant 1 : index
      %c17_83 = arith.constant 17 : index
      %c0_84 = arith.constant 0 : index
      %139 = vector.load %arg7[%c1_82, %c17_83, %c0_84] : memref<2x24x128xf32, #tpu.memory_space<vmem>>, vector<1x1x16xf32>
      %140 = vector.shape_cast %139 : vector<1x1x16xf32> to vector<1x16xf32>
      %141 = vector.shape_cast %138 : vector<1x16xf32> to vector<1x1x16xf32>
      tpu.vector_store %arg7[%c1_82, %c17_83, %c0_84], %141 {strides = array<i32>} : memref<2x24x128xf32, #tpu.memory_space<vmem>>, vector<1x1x16xf32>,
      %142 = vector.extract_strided_slice %19 {offsets = [0, 240], sizes = [1, 16], strides = [1, 1]} : vector<1x256xf32> to vector<1x16xf32>
      %c0_85 = arith.constant 0 : index
      %c18 = arith.constant 18 : index
      %c0_86 = arith.constant 0 : index
      %143 = vector.load %arg7[%c0_85, %c18, %c0_86] : memref<2x24x128xf32, #tpu.memory_space<vmem>>, vector<1x1x16xf32>
      %144 = vector.shape_cast %143 : vector<1x1x16xf32> to vector<1x16xf32>
      %145 = vector.shape_cast %142 : vector<1x16xf32> to vector<1x1x16xf32>
      tpu.vector_store %arg7[%c0_85, %c18, %c0_86], %145 {strides = array<i32>} : memref<2x24x128xf32, #tpu.memory_space<vmem>>, vector<1x1x16xf32>,
      %146 = vector.extract_strided_slice %21 {offsets = [0, 240], sizes = [1, 16], strides = [1, 1]} : vector<1x256xf32> to vector<1x16xf32>
      %c1_87 = arith.constant 1 : index
      %c18_88 = arith.constant 18 : index
      %c0_89 = arith.constant 0 : index
      %147 = vector.load %arg7[%c1_87, %c18_88, %c0_89] : memref<2x24x128xf32, #tpu.memory_space<vmem>>, vector<1x1x16xf32>
      %148 = vector.shape_cast %147 : vector<1x1x16xf32> to vector<1x16xf32>
      %149 = vector.shape_cast %146 : vector<1x16xf32> to vector<1x1x16xf32>
      tpu.vector_store %arg7[%c1_87, %c18_88, %c0_89], %149 {strides = array<i32>} : memref<2x24x128xf32, #tpu.memory_space<vmem>>, vector<1x1x16xf32>,
      %c0_90 = arith.constant 0 : index
      %150 = memref.load %arg3[%c0_90] : memref<1xf32, #tpu.memory_space<smem>>
      %c0_91 = arith.constant 0 : index
      %151 = memref.load %arg2[%c0_91] : memref<98xf32, #tpu.memory_space<smem>>
      %c1_92 = arith.constant 1 : index
      %152 = memref.load %arg2[%c1_92] : memref<98xf32, #tpu.memory_space<smem>>
      %c2 = arith.constant 2 : index
      %153 = memref.load %arg2[%c2] : memref<98xf32, #tpu.memory_space<smem>>
      %c3_93 = arith.constant 3 : index
      %154 = memref.load %arg2[%c3_93] : memref<98xf32, #tpu.memory_space<smem>>
      %c4_94 = arith.constant 4 : index
      %155 = memref.load %arg2[%c4_94] : memref<98xf32, #tpu.memory_space<smem>>
      %c5_95 = arith.constant 5 : index
      %156 = memref.load %arg2[%c5_95] : memref<98xf32, #tpu.memory_space<smem>>
      %c6_96 = arith.constant 6 : index
      %157 = memref.load %arg2[%c6_96] : memref<98xf32, #tpu.memory_space<smem>>
      %c7_97 = arith.constant 7 : index
      %158 = memref.load %arg2[%c7_97] : memref<98xf32, #tpu.memory_space<smem>>
      %c8_98 = arith.constant 8 : index
      %159 = memref.load %arg2[%c8_98] : memref<98xf32, #tpu.memory_space<smem>>
      %c9_99 = arith.constant 9 : index
      %160 = memref.load %arg2[%c9_99] : memref<98xf32, #tpu.memory_space<smem>>
      %c10_100 = arith.constant 10 : index
      %161 = memref.load %arg2[%c10_100] : memref<98xf32, #tpu.memory_space<smem>>
      %c11_101 = arith.constant 11 : index
      %162 = memref.load %arg2[%c11_101] : memref<98xf32, #tpu.memory_space<smem>>
      %c12_102 = arith.constant 12 : index
      %163 = memref.load %arg2[%c12_102] : memref<98xf32, #tpu.memory_space<smem>>
      %c13_103 = arith.constant 13 : index
      %164 = memref.load %arg2[%c13_103] : memref<98xf32, #tpu.memory_space<smem>>
      %c14_104 = arith.constant 14 : index
      %165 = memref.load %arg2[%c14_104] : memref<98xf32, #tpu.memory_space<smem>>
      %c15_105 = arith.constant 15 : index
      %166 = memref.load %arg2[%c15_105] : memref<98xf32, #tpu.memory_space<smem>>
      %c16_106 = arith.constant 16 : index
      %167 = memref.load %arg2[%c16_106] : memref<98xf32, #tpu.memory_space<smem>>
      %c17_107 = arith.constant 17 : index
      %168 = memref.load %arg2[%c17_107] : memref<98xf32, #tpu.memory_space<smem>>
      %c18_108 = arith.constant 18 : index
      %169 = memref.load %arg2[%c18_108] : memref<98xf32, #tpu.memory_space<smem>>
      %c19 = arith.constant 19 : index
      %170 = memref.load %arg2[%c19] : memref<98xf32, #tpu.memory_space<smem>>
      %c20 = arith.constant 20 : index
      %171 = memref.load %arg2[%c20] : memref<98xf32, #tpu.memory_space<smem>>
      %c21 = arith.constant 21 : index
      %172 = memref.load %arg2[%c21] : memref<98xf32, #tpu.memory_space<smem>>
      %c22 = arith.constant 22 : index
      %173 = memref.load %arg2[%c22] : memref<98xf32, #tpu.memory_space<smem>>
      %c23 = arith.constant 23 : index
      %174 = memref.load %arg2[%c23] : memref<98xf32, #tpu.memory_space<smem>>
      %c24 = arith.constant 24 : index
      %175 = memref.load %arg2[%c24] : memref<98xf32, #tpu.memory_space<smem>>
      %c25 = arith.constant 25 : index
      %176 = memref.load %arg2[%c25] : memref<98xf32, #tpu.memory_space<smem>>
      %c26 = arith.constant 26 : index
      %177 = memref.load %arg2[%c26] : memref<98xf32, #tpu.memory_space<smem>>
      %c27 = arith.constant 27 : index
      %178 = memref.load %arg2[%c27] : memref<98xf32, #tpu.memory_space<smem>>
      %c28 = arith.constant 28 : index
      %179 = memref.load %arg2[%c28] : memref<98xf32, #tpu.memory_space<smem>>
      %c29 = arith.constant 29 : index
      %180 = memref.load %arg2[%c29] : memref<98xf32, #tpu.memory_space<smem>>
      %c30 = arith.constant 30 : index
      %181 = memref.load %arg2[%c30] : memref<98xf32, #tpu.memory_space<smem>>
      %c31 = arith.constant 31 : index
      %182 = memref.load %arg2[%c31] : memref<98xf32, #tpu.memory_space<smem>>
      %c32 = arith.constant 32 : index
      %183 = memref.load %arg2[%c32] : memref<98xf32, #tpu.memory_space<smem>>
      %c33 = arith.constant 33 : index
      %184 = memref.load %arg2[%c33] : memref<98xf32, #tpu.memory_space<smem>>
      %c34 = arith.constant 34 : index
      %185 = memref.load %arg2[%c34] : memref<98xf32, #tpu.memory_space<smem>>
      %c35 = arith.constant 35 : index
      %186 = memref.load %arg2[%c35] : memref<98xf32, #tpu.memory_space<smem>>
      %c36 = arith.constant 36 : index
      %187 = memref.load %arg2[%c36] : memref<98xf32, #tpu.memory_space<smem>>
      %c37 = arith.constant 37 : index
      %188 = memref.load %arg2[%c37] : memref<98xf32, #tpu.memory_space<smem>>
      %c38 = arith.constant 38 : index
      %189 = memref.load %arg2[%c38] : memref<98xf32, #tpu.memory_space<smem>>
      %c39 = arith.constant 39 : index
      %190 = memref.load %arg2[%c39] : memref<98xf32, #tpu.memory_space<smem>>
      %c40 = arith.constant 40 : index
      %191 = memref.load %arg2[%c40] : memref<98xf32, #tpu.memory_space<smem>>
      %c41 = arith.constant 41 : index
      %192 = memref.load %arg2[%c41] : memref<98xf32, #tpu.memory_space<smem>>
      %c42 = arith.constant 42 : index
      %193 = memref.load %arg2[%c42] : memref<98xf32, #tpu.memory_space<smem>>
      %c43 = arith.constant 43 : index
      %194 = memref.load %arg2[%c43] : memref<98xf32, #tpu.memory_space<smem>>
      %c44 = arith.constant 44 : index
      %195 = memref.load %arg2[%c44] : memref<98xf32, #tpu.memory_space<smem>>
      %c45 = arith.constant 45 : index
      %196 = memref.load %arg2[%c45] : memref<98xf32, #tpu.memory_space<smem>>
      %c46 = arith.constant 46 : index
      %197 = memref.load %arg2[%c46] : memref<98xf32, #tpu.memory_space<smem>>
      %c47 = arith.constant 47 : index
      %198 = memref.load %arg2[%c47] : memref<98xf32, #tpu.memory_space<smem>>
      %c48 = arith.constant 48 : index
      %199 = memref.load %arg2[%c48] : memref<98xf32, #tpu.memory_space<smem>>
      %c49 = arith.constant 49 : index
      %200 = memref.load %arg2[%c49] : memref<98xf32, #tpu.memory_space<smem>>
      %c50 = arith.constant 50 : index
      %201 = memref.load %arg2[%c50] : memref<98xf32, #tpu.memory_space<smem>>
      %c51 = arith.constant 51 : index
      %202 = memref.load %arg2[%c51] : memref<98xf32, #tpu.memory_space<smem>>
      %c52 = arith.constant 52 : index
      %203 = memref.load %arg2[%c52] : memref<98xf32, #tpu.memory_space<smem>>
      %c53 = arith.constant 53 : index
      %204 = memref.load %arg2[%c53] : memref<98xf32, #tpu.memory_space<smem>>
      %c54 = arith.constant 54 : index
      %205 = memref.load %arg2[%c54] : memref<98xf32, #tpu.memory_space<smem>>
      %c55 = arith.constant 55 : index
      %206 = memref.load %arg2[%c55] : memref<98xf32, #tpu.memory_space<smem>>
      %c56 = arith.constant 56 : index
      %207 = memref.load %arg2[%c56] : memref<98xf32, #tpu.memory_space<smem>>
      %c57 = arith.constant 57 : index
      %208 = memref.load %arg2[%c57] : memref<98xf32, #tpu.memory_space<smem>>
      %c58 = arith.constant 58 : index
      %209 = memref.load %arg2[%c58] : memref<98xf32, #tpu.memory_space<smem>>
      %c59 = arith.constant 59 : index
      %210 = memref.load %arg2[%c59] : memref<98xf32, #tpu.memory_space<smem>>
      %c60 = arith.constant 60 : index
      %211 = memref.load %arg2[%c60] : memref<98xf32, #tpu.memory_space<smem>>
      %c61 = arith.constant 61 : index
      %212 = memref.load %arg2[%c61] : memref<98xf32, #tpu.memory_space<smem>>
      %c62 = arith.constant 62 : index
      %213 = memref.load %arg2[%c62] : memref<98xf32, #tpu.memory_space<smem>>
      %c63 = arith.constant 63 : index
      %214 = memref.load %arg2[%c63] : memref<98xf32, #tpu.memory_space<smem>>
      %c64 = arith.constant 64 : index
      %215 = memref.load %arg2[%c64] : memref<98xf32, #tpu.memory_space<smem>>
      %c65 = arith.constant 65 : index
      %216 = memref.load %arg2[%c65] : memref<98xf32, #tpu.memory_space<smem>>
      %c66 = arith.constant 66 : index
      %217 = memref.load %arg2[%c66] : memref<98xf32, #tpu.memory_space<smem>>
      %c67 = arith.constant 67 : index
      %218 = memref.load %arg2[%c67] : memref<98xf32, #tpu.memory_space<smem>>
      %c68 = arith.constant 68 : index
      %219 = memref.load %arg2[%c68] : memref<98xf32, #tpu.memory_space<smem>>
      %c69 = arith.constant 69 : index
      %220 = memref.load %arg2[%c69] : memref<98xf32, #tpu.memory_space<smem>>
      %c70 = arith.constant 70 : index
      %221 = memref.load %arg2[%c70] : memref<98xf32, #tpu.memory_space<smem>>
      %c71 = arith.constant 71 : index
      %222 = memref.load %arg2[%c71] : memref<98xf32, #tpu.memory_space<smem>>
      %c72 = arith.constant 72 : index
      %223 = memref.load %arg2[%c72] : memref<98xf32, #tpu.memory_space<smem>>
      %c73 = arith.constant 73 : index
      %224 = memref.load %arg2[%c73] : memref<98xf32, #tpu.memory_space<smem>>
      %c74 = arith.constant 74 : index
      %225 = memref.load %arg2[%c74] : memref<98xf32, #tpu.memory_space<smem>>
      %c75 = arith.constant 75 : index
      %226 = memref.load %arg2[%c75] : memref<98xf32, #tpu.memory_space<smem>>
      %c76 = arith.constant 76 : index
      %227 = memref.load %arg2[%c76] : memref<98xf32, #tpu.memory_space<smem>>
      %c77 = arith.constant 77 : index
      %228 = memref.load %arg2[%c77] : memref<98xf32, #tpu.memory_space<smem>>
      %c78 = arith.constant 78 : index
      %229 = memref.load %arg2[%c78] : memref<98xf32, #tpu.memory_space<smem>>
      %c79 = arith.constant 79 : index
      %230 = memref.load %arg2[%c79] : memref<98xf32, #tpu.memory_space<smem>>
      %c80 = arith.constant 80 : index
      %231 = memref.load %arg2[%c80] : memref<98xf32, #tpu.memory_space<smem>>
      %c81 = arith.constant 81 : index
      %232 = memref.load %arg2[%c81] : memref<98xf32, #tpu.memory_space<smem>>
      %c82 = arith.constant 82 : index
      %233 = memref.load %arg2[%c82] : memref<98xf32, #tpu.memory_space<smem>>
      %c83 = arith.constant 83 : index
      %234 = memref.load %arg2[%c83] : memref<98xf32, #tpu.memory_space<smem>>
      %c84 = arith.constant 84 : index
      %235 = memref.load %arg2[%c84] : memref<98xf32, #tpu.memory_space<smem>>
      %c85 = arith.constant 85 : index
      %236 = memref.load %arg2[%c85] : memref<98xf32, #tpu.memory_space<smem>>
      %c86 = arith.constant 86 : index
      %237 = memref.load %arg2[%c86] : memref<98xf32, #tpu.memory_space<smem>>
      %c87 = arith.constant 87 : index
      %238 = memref.load %arg2[%c87] : memref<98xf32, #tpu.memory_space<smem>>
      %c88 = arith.constant 88 : index
      %239 = memref.load %arg2[%c88] : memref<98xf32, #tpu.memory_space<smem>>
      %c89 = arith.constant 89 : index
      %240 = memref.load %arg2[%c89] : memref<98xf32, #tpu.memory_space<smem>>
      %c90 = arith.constant 90 : index
      %241 = memref.load %arg2[%c90] : memref<98xf32, #tpu.memory_space<smem>>
      %c91 = arith.constant 91 : index
      %242 = memref.load %arg2[%c91] : memref<98xf32, #tpu.memory_space<smem>>
      %c92 = arith.constant 92 : index
      %243 = memref.load %arg2[%c92] : memref<98xf32, #tpu.memory_space<smem>>
      %c93 = arith.constant 93 : index
      %244 = memref.load %arg2[%c93] : memref<98xf32, #tpu.memory_space<smem>>
      %c94 = arith.constant 94 : index
      %245 = memref.load %arg2[%c94] : memref<98xf32, #tpu.memory_space<smem>>
      %c95 = arith.constant 95 : index
      %246 = memref.load %arg2[%c95] : memref<98xf32, #tpu.memory_space<smem>>
      %c96 = arith.constant 96 : index
      %247 = memref.load %arg2[%c96] : memref<98xf32, #tpu.memory_space<smem>>
      %c97 = arith.constant 97 : index
      %248 = memref.load %arg2[%c97] : memref<98xf32, #tpu.memory_space<smem>>
      %249 = vector.broadcast %150 : f32 to vector<16x128xf32>
      %cst_109 = arith.constant 0.000000e+00 : f32
      %250 = vector.broadcast %cst_109 : f32 to vector<16x128xf32>
      %c0_110 = arith.constant 0 : index
      %c0_111 = arith.constant 0 : index
      %c0_112 = arith.constant 0 : index
      %251 = vector.load %arg7[%c0_110, %c0_111, %c0_112] : memref<2x24x128xf32, #tpu.memory_space<vmem>>, vector<1x24x128xf32>
      %252 = vector.shape_cast %251 : vector<1x24x128xf32> to vector<24x128xf32>
      %c3_i32 = arith.constant 3 : i32
      %253 = tpu.dynamic_rotate %252 by %c3_i32 dim 1 : vector<24x128xf32>, i32 -> vector<24x128xf32>
      %c2_i32 = arith.constant 2 : i32
      %254 = tpu.dynamic_rotate %252 by %c2_i32 dim 1 : vector<24x128xf32>, i32 -> vector<24x128xf32>
      %c1_i32 = arith.constant 1 : i32
      %255 = tpu.dynamic_rotate %252 by %c1_i32 dim 1 : vector<24x128xf32>, i32 -> vector<24x128xf32>
      %c127_i32 = arith.constant 127 : i32
      %256 = tpu.dynamic_rotate %252 by %c127_i32 dim 1 : vector<24x128xf32>, i32 -> vector<24x128xf32>
      %c126_i32 = arith.constant 126 : i32
      %257 = tpu.dynamic_rotate %252 by %c126_i32 dim 1 : vector<24x128xf32>, i32 -> vector<24x128xf32>
      %c125_i32 = arith.constant 125 : i32
      %258 = tpu.dynamic_rotate %252 by %c125_i32 dim 1 : vector<24x128xf32>, i32 -> vector<24x128xf32>
      %259 = vector.broadcast %151 : f32 to vector<24x128xf32>
      %260 = arith.mulf %253, %259 : vector<24x128xf32>
      %261 = vector.broadcast %152 : f32 to vector<24x128xf32>
      %262 = arith.mulf %254, %261 : vector<24x128xf32>
      %263 = arith.addf %260, %262 : vector<24x128xf32>
      %264 = vector.broadcast %153 : f32 to vector<24x128xf32>
      %265 = arith.mulf %255, %264 : vector<24x128xf32>
      %266 = arith.addf %263, %265 : vector<24x128xf32>
      %267 = vector.broadcast %154 : f32 to vector<24x128xf32>
      %268 = arith.mulf %252, %267 : vector<24x128xf32>
      %269 = arith.addf %266, %268 : vector<24x128xf32>
      %270 = vector.broadcast %155 : f32 to vector<24x128xf32>
      %271 = arith.mulf %256, %270 : vector<24x128xf32>
      %272 = arith.addf %269, %271 : vector<24x128xf32>
      %273 = vector.broadcast %156 : f32 to vector<24x128xf32>
      %274 = arith.mulf %257, %273 : vector<24x128xf32>
      %275 = arith.addf %272, %274 : vector<24x128xf32>
      %276 = vector.broadcast %157 : f32 to vector<24x128xf32>
      %277 = arith.mulf %258, %276 : vector<24x128xf32>
      %278 = arith.addf %275, %277 : vector<24x128xf32>
      %279 = vector.extract_strided_slice %278 {offsets = [0, 0], sizes = [16, 128], strides = [1, 1]} : vector<24x128xf32> to vector<16x128xf32>
      %280 = arith.addf %249, %279 : vector<16x128xf32>
      %281 = vector.broadcast %158 : f32 to vector<24x128xf32>
      %282 = arith.mulf %253, %281 : vector<24x128xf32>
      %283 = vector.broadcast %159 : f32 to vector<24x128xf32>
      %284 = arith.mulf %254, %283 : vector<24x128xf32>
      %285 = arith.addf %282, %284 : vector<24x128xf32>
      %286 = vector.broadcast %160 : f32 to vector<24x128xf32>
      %287 = arith.mulf %255, %286 : vector<24x128xf32>
      %288 = arith.addf %285, %287 : vector<24x128xf32>
      %289 = vector.broadcast %161 : f32 to vector<24x128xf32>
      %290 = arith.mulf %252, %289 : vector<24x128xf32>
      %291 = arith.addf %288, %290 : vector<24x128xf32>
      %292 = vector.broadcast %162 : f32 to vector<24x128xf32>
      %293 = arith.mulf %256, %292 : vector<24x128xf32>
      %294 = arith.addf %291, %293 : vector<24x128xf32>
      %295 = vector.broadcast %163 : f32 to vector<24x128xf32>
      %296 = arith.mulf %257, %295 : vector<24x128xf32>
      %297 = arith.addf %294, %296 : vector<24x128xf32>
      %298 = vector.broadcast %164 : f32 to vector<24x128xf32>
      %299 = arith.mulf %258, %298 : vector<24x128xf32>
      %300 = arith.addf %297, %299 : vector<24x128xf32>
      %301 = vector.extract_strided_slice %300 {offsets = [1, 0], sizes = [16, 128], strides = [1, 1]} : vector<24x128xf32> to vector<16x128xf32>
      %302 = arith.addf %250, %301 : vector<16x128xf32>
      %303 = vector.broadcast %165 : f32 to vector<24x128xf32>
      %304 = arith.mulf %253, %303 : vector<24x128xf32>
      %305 = vector.broadcast %166 : f32 to vector<24x128xf32>
      %306 = arith.mulf %254, %305 : vector<24x128xf32>
      %307 = arith.addf %304, %306 : vector<24x128xf32>
      %308 = vector.broadcast %167 : f32 to vector<24x128xf32>
      %309 = arith.mulf %255, %308 : vector<24x128xf32>
      %310 = arith.addf %307, %309 : vector<24x128xf32>
      %311 = vector.broadcast %168 : f32 to vector<24x128xf32>
      %312 = arith.mulf %252, %311 : vector<24x128xf32>
      %313 = arith.addf %310, %312 : vector<24x128xf32>
      %314 = vector.broadcast %169 : f32 to vector<24x128xf32>
      %315 = arith.mulf %256, %314 : vector<24x128xf32>
      %316 = arith.addf %313, %315 : vector<24x128xf32>
      %317 = vector.broadcast %170 : f32 to vector<24x128xf32>
      %318 = arith.mulf %257, %317 : vector<24x128xf32>
      %319 = arith.addf %316, %318 : vector<24x128xf32>
      %320 = vector.broadcast %171 : f32 to vector<24x128xf32>
      %321 = arith.mulf %258, %320 : vector<24x128xf32>
      %322 = arith.addf %319, %321 : vector<24x128xf32>
      %323 = vector.extract_strided_slice %322 {offsets = [2, 0], sizes = [16, 128], strides = [1, 1]} : vector<24x128xf32> to vector<16x128xf32>
      %324 = arith.addf %280, %323 : vector<16x128xf32>
      %325 = vector.broadcast %172 : f32 to vector<24x128xf32>
      %326 = arith.mulf %253, %325 : vector<24x128xf32>
      %327 = vector.broadcast %173 : f32 to vector<24x128xf32>
      %328 = arith.mulf %254, %327 : vector<24x128xf32>
      %329 = arith.addf %326, %328 : vector<24x128xf32>
      %330 = vector.broadcast %174 : f32 to vector<24x128xf32>
      %331 = arith.mulf %255, %330 : vector<24x128xf32>
      %332 = arith.addf %329, %331 : vector<24x128xf32>
      %333 = vector.broadcast %175 : f32 to vector<24x128xf32>
      %334 = arith.mulf %252, %333 : vector<24x128xf32>
      %335 = arith.addf %332, %334 : vector<24x128xf32>
      %336 = vector.broadcast %176 : f32 to vector<24x128xf32>
      %337 = arith.mulf %256, %336 : vector<24x128xf32>
      %338 = arith.addf %335, %337 : vector<24x128xf32>
      %339 = vector.broadcast %177 : f32 to vector<24x128xf32>
      %340 = arith.mulf %257, %339 : vector<24x128xf32>
      %341 = arith.addf %338, %340 : vector<24x128xf32>
      %342 = vector.broadcast %178 : f32 to vector<24x128xf32>
      %343 = arith.mulf %258, %342 : vector<24x128xf32>
      %344 = arith.addf %341, %343 : vector<24x128xf32>
      %345 = vector.extract_strided_slice %344 {offsets = [3, 0], sizes = [16, 128], strides = [1, 1]} : vector<24x128xf32> to vector<16x128xf32>
      %346 = arith.addf %302, %345 : vector<16x128xf32>
      %347 = vector.broadcast %179 : f32 to vector<24x128xf32>
      %348 = arith.mulf %253, %347 : vector<24x128xf32>
      %349 = vector.broadcast %180 : f32 to vector<24x128xf32>
      %350 = arith.mulf %254, %349 : vector<24x128xf32>
      %351 = arith.addf %348, %350 : vector<24x128xf32>
      %352 = vector.broadcast %181 : f32 to vector<24x128xf32>
      %353 = arith.mulf %255, %352 : vector<24x128xf32>
      %354 = arith.addf %351, %353 : vector<24x128xf32>
      %355 = vector.broadcast %182 : f32 to vector<24x128xf32>
      %356 = arith.mulf %252, %355 : vector<24x128xf32>
      %357 = arith.addf %354, %356 : vector<24x128xf32>
      %358 = vector.broadcast %183 : f32 to vector<24x128xf32>
      %359 = arith.mulf %256, %358 : vector<24x128xf32>
      %360 = arith.addf %357, %359 : vector<24x128xf32>
      %361 = vector.broadcast %184 : f32 to vector<24x128xf32>
      %362 = arith.mulf %257, %361 : vector<24x128xf32>
      %363 = arith.addf %360, %362 : vector<24x128xf32>
      %364 = vector.broadcast %185 : f32 to vector<24x128xf32>
      %365 = arith.mulf %258, %364 : vector<24x128xf32>
      %366 = arith.addf %363, %365 : vector<24x128xf32>
      %367 = vector.extract_strided_slice %366 {offsets = [4, 0], sizes = [16, 128], strides = [1, 1]} : vector<24x128xf32> to vector<16x128xf32>
      %368 = arith.addf %324, %367 : vector<16x128xf32>
      %369 = vector.broadcast %186 : f32 to vector<24x128xf32>
      %370 = arith.mulf %253, %369 : vector<24x128xf32>
      %371 = vector.broadcast %187 : f32 to vector<24x128xf32>
      %372 = arith.mulf %254, %371 : vector<24x128xf32>
      %373 = arith.addf %370, %372 : vector<24x128xf32>
      %374 = vector.broadcast %188 : f32 to vector<24x128xf32>
      %375 = arith.mulf %255, %374 : vector<24x128xf32>
      %376 = arith.addf %373, %375 : vector<24x128xf32>
      %377 = vector.broadcast %189 : f32 to vector<24x128xf32>
      %378 = arith.mulf %252, %377 : vector<24x128xf32>
      %379 = arith.addf %376, %378 : vector<24x128xf32>
      %380 = vector.broadcast %190 : f32 to vector<24x128xf32>
      %381 = arith.mulf %256, %380 : vector<24x128xf32>
      %382 = arith.addf %379, %381 : vector<24x128xf32>
      %383 = vector.broadcast %191 : f32 to vector<24x128xf32>
      %384 = arith.mulf %257, %383 : vector<24x128xf32>
      %385 = arith.addf %382, %384 : vector<24x128xf32>
      %386 = vector.broadcast %192 : f32 to vector<24x128xf32>
      %387 = arith.mulf %258, %386 : vector<24x128xf32>
      %388 = arith.addf %385, %387 : vector<24x128xf32>
      %389 = vector.extract_strided_slice %388 {offsets = [5, 0], sizes = [16, 128], strides = [1, 1]} : vector<24x128xf32> to vector<16x128xf32>
      %390 = arith.addf %346, %389 : vector<16x128xf32>
      %391 = vector.broadcast %193 : f32 to vector<24x128xf32>
      %392 = arith.mulf %253, %391 : vector<24x128xf32>
      %393 = vector.broadcast %194 : f32 to vector<24x128xf32>
      %394 = arith.mulf %254, %393 : vector<24x128xf32>
      %395 = arith.addf %392, %394 : vector<24x128xf32>
      %396 = vector.broadcast %195 : f32 to vector<24x128xf32>
      %397 = arith.mulf %255, %396 : vector<24x128xf32>
      %398 = arith.addf %395, %397 : vector<24x128xf32>
      %399 = vector.broadcast %196 : f32 to vector<24x128xf32>
      %400 = arith.mulf %252, %399 : vector<24x128xf32>
      %401 = arith.addf %398, %400 : vector<24x128xf32>
      %402 = vector.broadcast %197 : f32 to vector<24x128xf32>
      %403 = arith.mulf %256, %402 : vector<24x128xf32>
      %404 = arith.addf %401, %403 : vector<24x128xf32>
      %405 = vector.broadcast %198 : f32 to vector<24x128xf32>
      %406 = arith.mulf %257, %405 : vector<24x128xf32>
      %407 = arith.addf %404, %406 : vector<24x128xf32>
      %408 = vector.broadcast %199 : f32 to vector<24x128xf32>
      %409 = arith.mulf %258, %408 : vector<24x128xf32>
      %410 = arith.addf %407, %409 : vector<24x128xf32>
      %411 = vector.extract_strided_slice %410 {offsets = [6, 0], sizes = [16, 128], strides = [1, 1]} : vector<24x128xf32> to vector<16x128xf32>
      %412 = arith.addf %368, %411 : vector<16x128xf32>
      %c1_113 = arith.constant 1 : index
      %c0_114 = arith.constant 0 : index
      %c0_115 = arith.constant 0 : index
      %413 = vector.load %arg7[%c1_113, %c0_114, %c0_115] : memref<2x24x128xf32, #tpu.memory_space<vmem>>, vector<1x24x128xf32>
      %414 = vector.shape_cast %413 : vector<1x24x128xf32> to vector<24x128xf32>
      %c3_i32_116 = arith.constant 3 : i32
      %415 = tpu.dynamic_rotate %414 by %c3_i32_116 dim 1 : vector<24x128xf32>, i32 -> vector<24x128xf32>
      %c2_i32_117 = arith.constant 2 : i32
      %416 = tpu.dynamic_rotate %414 by %c2_i32_117 dim 1 : vector<24x128xf32>, i32 -> vector<24x128xf32>
      %c1_i32_118 = arith.constant 1 : i32
      %417 = tpu.dynamic_rotate %414 by %c1_i32_118 dim 1 : vector<24x128xf32>, i32 -> vector<24x128xf32>
      %c127_i32_119 = arith.constant 127 : i32
      %418 = tpu.dynamic_rotate %414 by %c127_i32_119 dim 1 : vector<24x128xf32>, i32 -> vector<24x128xf32>
      %c126_i32_120 = arith.constant 126 : i32
      %419 = tpu.dynamic_rotate %414 by %c126_i32_120 dim 1 : vector<24x128xf32>, i32 -> vector<24x128xf32>
      %c125_i32_121 = arith.constant 125 : i32
      %420 = tpu.dynamic_rotate %414 by %c125_i32_121 dim 1 : vector<24x128xf32>, i32 -> vector<24x128xf32>
      %421 = vector.broadcast %200 : f32 to vector<24x128xf32>
      %422 = arith.mulf %415, %421 : vector<24x128xf32>
      %423 = vector.broadcast %201 : f32 to vector<24x128xf32>
      %424 = arith.mulf %416, %423 : vector<24x128xf32>
      %425 = arith.addf %422, %424 : vector<24x128xf32>
      %426 = vector.broadcast %202 : f32 to vector<24x128xf32>
      %427 = arith.mulf %417, %426 : vector<24x128xf32>
      %428 = arith.addf %425, %427 : vector<24x128xf32>
      %429 = vector.broadcast %203 : f32 to vector<24x128xf32>
      %430 = arith.mulf %414, %429 : vector<24x128xf32>
      %431 = arith.addf %428, %430 : vector<24x128xf32>
      %432 = vector.broadcast %204 : f32 to vector<24x128xf32>
      %433 = arith.mulf %418, %432 : vector<24x128xf32>
      %434 = arith.addf %431, %433 : vector<24x128xf32>
      %435 = vector.broadcast %205 : f32 to vector<24x128xf32>
      %436 = arith.mulf %419, %435 : vector<24x128xf32>
      %437 = arith.addf %434, %436 : vector<24x128xf32>
      %438 = vector.broadcast %206 : f32 to vector<24x128xf32>
      %439 = arith.mulf %420, %438 : vector<24x128xf32>
      %440 = arith.addf %437, %439 : vector<24x128xf32>
      %441 = vector.extract_strided_slice %440 {offsets = [0, 0], sizes = [16, 128], strides = [1, 1]} : vector<24x128xf32> to vector<16x128xf32>
      %442 = arith.addf %390, %441 : vector<16x128xf32>
      %443 = vector.broadcast %207 : f32 to vector<24x128xf32>
      %444 = arith.mulf %415, %443 : vector<24x128xf32>
      %445 = vector.broadcast %208 : f32 to vector<24x128xf32>
      %446 = arith.mulf %416, %445 : vector<24x128xf32>
      %447 = arith.addf %444, %446 : vector<24x128xf32>
      %448 = vector.broadcast %209 : f32 to vector<24x128xf32>
      %449 = arith.mulf %417, %448 : vector<24x128xf32>
      %450 = arith.addf %447, %449 : vector<24x128xf32>
      %451 = vector.broadcast %210 : f32 to vector<24x128xf32>
      %452 = arith.mulf %414, %451 : vector<24x128xf32>
      %453 = arith.addf %450, %452 : vector<24x128xf32>
      %454 = vector.broadcast %211 : f32 to vector<24x128xf32>
      %455 = arith.mulf %418, %454 : vector<24x128xf32>
      %456 = arith.addf %453, %455 : vector<24x128xf32>
      %457 = vector.broadcast %212 : f32 to vector<24x128xf32>
      %458 = arith.mulf %419, %457 : vector<24x128xf32>
      %459 = arith.addf %456, %458 : vector<24x128xf32>
      %460 = vector.broadcast %213 : f32 to vector<24x128xf32>
      %461 = arith.mulf %420, %460 : vector<24x128xf32>
      %462 = arith.addf %459, %461 : vector<24x128xf32>
      %463 = vector.extract_strided_slice %462 {offsets = [1, 0], sizes = [16, 128], strides = [1, 1]} : vector<24x128xf32> to vector<16x128xf32>
      %464 = arith.addf %412, %463 : vector<16x128xf32>
      %465 = vector.broadcast %214 : f32 to vector<24x128xf32>
      %466 = arith.mulf %415, %465 : vector<24x128xf32>
      %467 = vector.broadcast %215 : f32 to vector<24x128xf32>
      %468 = arith.mulf %416, %467 : vector<24x128xf32>
      %469 = arith.addf %466, %468 : vector<24x128xf32>
      %470 = vector.broadcast %216 : f32 to vector<24x128xf32>
      %471 = arith.mulf %417, %470 : vector<24x128xf32>
      %472 = arith.addf %469, %471 : vector<24x128xf32>
      %473 = vector.broadcast %217 : f32 to vector<24x128xf32>
      %474 = arith.mulf %414, %473 : vector<24x128xf32>
      %475 = arith.addf %472, %474 : vector<24x128xf32>
      %476 = vector.broadcast %218 : f32 to vector<24x128xf32>
      %477 = arith.mulf %418, %476 : vector<24x128xf32>
      %478 = arith.addf %475, %477 : vector<24x128xf32>
      %479 = vector.broadcast %219 : f32 to vector<24x128xf32>
      %480 = arith.mulf %419, %479 : vector<24x128xf32>
      %481 = arith.addf %478, %480 : vector<24x128xf32>
      %482 = vector.broadcast %220 : f32 to vector<24x128xf32>
      %483 = arith.mulf %420, %482 : vector<24x128xf32>
      %484 = arith.addf %481, %483 : vector<24x128xf32>
      %485 = vector.extract_strided_slice %484 {offsets = [2, 0], sizes = [16, 128], strides = [1, 1]} : vector<24x128xf32> to vector<16x128xf32>
      %486 = arith.addf %442, %485 : vector<16x128xf32>
      %487 = vector.broadcast %221 : f32 to vector<24x128xf32>
      %488 = arith.mulf %415, %487 : vector<24x128xf32>
      %489 = vector.broadcast %222 : f32 to vector<24x128xf32>
      %490 = arith.mulf %416, %489 : vector<24x128xf32>
      %491 = arith.addf %488, %490 : vector<24x128xf32>
      %492 = vector.broadcast %223 : f32 to vector<24x128xf32>
      %493 = arith.mulf %417, %492 : vector<24x128xf32>
      %494 = arith.addf %491, %493 : vector<24x128xf32>
      %495 = vector.broadcast %224 : f32 to vector<24x128xf32>
      %496 = arith.mulf %414, %495 : vector<24x128xf32>
      %497 = arith.addf %494, %496 : vector<24x128xf32>
      %498 = vector.broadcast %225 : f32 to vector<24x128xf32>
      %499 = arith.mulf %418, %498 : vector<24x128xf32>
      %500 = arith.addf %497, %499 : vector<24x128xf32>
      %501 = vector.broadcast %226 : f32 to vector<24x128xf32>
      %502 = arith.mulf %419, %501 : vector<24x128xf32>
      %503 = arith.addf %500, %502 : vector<24x128xf32>
      %504 = vector.broadcast %227 : f32 to vector<24x128xf32>
      %505 = arith.mulf %420, %504 : vector<24x128xf32>
      %506 = arith.addf %503, %505 : vector<24x128xf32>
      %507 = vector.extract_strided_slice %506 {offsets = [3, 0], sizes = [16, 128], strides = [1, 1]} : vector<24x128xf32> to vector<16x128xf32>
      %508 = arith.addf %464, %507 : vector<16x128xf32>
      %509 = vector.broadcast %228 : f32 to vector<24x128xf32>
      %510 = arith.mulf %415, %509 : vector<24x128xf32>
      %511 = vector.broadcast %229 : f32 to vector<24x128xf32>
      %512 = arith.mulf %416, %511 : vector<24x128xf32>
      %513 = arith.addf %510, %512 : vector<24x128xf32>
      %514 = vector.broadcast %230 : f32 to vector<24x128xf32>
      %515 = arith.mulf %417, %514 : vector<24x128xf32>
      %516 = arith.addf %513, %515 : vector<24x128xf32>
      %517 = vector.broadcast %231 : f32 to vector<24x128xf32>
      %518 = arith.mulf %414, %517 : vector<24x128xf32>
      %519 = arith.addf %516, %518 : vector<24x128xf32>
      %520 = vector.broadcast %232 : f32 to vector<24x128xf32>
      %521 = arith.mulf %418, %520 : vector<24x128xf32>
      %522 = arith.addf %519, %521 : vector<24x128xf32>
      %523 = vector.broadcast %233 : f32 to vector<24x128xf32>
      %524 = arith.mulf %419, %523 : vector<24x128xf32>
      %525 = arith.addf %522, %524 : vector<24x128xf32>
      %526 = vector.broadcast %234 : f32 to vector<24x128xf32>
      %527 = arith.mulf %420, %526 : vector<24x128xf32>
      %528 = arith.addf %525, %527 : vector<24x128xf32>
      %529 = vector.extract_strided_slice %528 {offsets = [4, 0], sizes = [16, 128], strides = [1, 1]} : vector<24x128xf32> to vector<16x128xf32>
      %530 = arith.addf %486, %529 : vector<16x128xf32>
      %531 = vector.broadcast %235 : f32 to vector<24x128xf32>
      %532 = arith.mulf %415, %531 : vector<24x128xf32>
      %533 = vector.broadcast %236 : f32 to vector<24x128xf32>
      %534 = arith.mulf %416, %533 : vector<24x128xf32>
      %535 = arith.addf %532, %534 : vector<24x128xf32>
      %536 = vector.broadcast %237 : f32 to vector<24x128xf32>
      %537 = arith.mulf %417, %536 : vector<24x128xf32>
      %538 = arith.addf %535, %537 : vector<24x128xf32>
      %539 = vector.broadcast %238 : f32 to vector<24x128xf32>
      %540 = arith.mulf %414, %539 : vector<24x128xf32>
      %541 = arith.addf %538, %540 : vector<24x128xf32>
      %542 = vector.broadcast %239 : f32 to vector<24x128xf32>
      %543 = arith.mulf %418, %542 : vector<24x128xf32>
      %544 = arith.addf %541, %543 : vector<24x128xf32>
      %545 = vector.broadcast %240 : f32 to vector<24x128xf32>
      %546 = arith.mulf %419, %545 : vector<24x128xf32>
      %547 = arith.addf %544, %546 : vector<24x128xf32>
      %548 = vector.broadcast %241 : f32 to vector<24x128xf32>
      %549 = arith.mulf %420, %548 : vector<24x128xf32>
      %550 = arith.addf %547, %549 : vector<24x128xf32>
      %551 = vector.extract_strided_slice %550 {offsets = [5, 0], sizes = [16, 128], strides = [1, 1]} : vector<24x128xf32> to vector<16x128xf32>
      %552 = arith.addf %508, %551 : vector<16x128xf32>
      %553 = vector.broadcast %242 : f32 to vector<24x128xf32>
      %554 = arith.mulf %415, %553 : vector<24x128xf32>
      %555 = vector.broadcast %243 : f32 to vector<24x128xf32>
      %556 = arith.mulf %416, %555 : vector<24x128xf32>
      %557 = arith.addf %554, %556 : vector<24x128xf32>
      %558 = vector.broadcast %244 : f32 to vector<24x128xf32>
      %559 = arith.mulf %417, %558 : vector<24x128xf32>
      %560 = arith.addf %557, %559 : vector<24x128xf32>
      %561 = vector.broadcast %245 : f32 to vector<24x128xf32>
      %562 = arith.mulf %414, %561 : vector<24x128xf32>
      %563 = arith.addf %560, %562 : vector<24x128xf32>
      %564 = vector.broadcast %246 : f32 to vector<24x128xf32>
      %565 = arith.mulf %418, %564 : vector<24x128xf32>
      %566 = arith.addf %563, %565 : vector<24x128xf32>
      %567 = vector.broadcast %247 : f32 to vector<24x128xf32>
      %568 = arith.mulf %419, %567 : vector<24x128xf32>
      %569 = arith.addf %566, %568 : vector<24x128xf32>
      %570 = vector.broadcast %248 : f32 to vector<24x128xf32>
      %571 = arith.mulf %420, %570 : vector<24x128xf32>
      %572 = arith.addf %569, %571 : vector<24x128xf32>
      %573 = vector.extract_strided_slice %572 {offsets = [6, 0], sizes = [16, 128], strides = [1, 1]} : vector<24x128xf32> to vector<16x128xf32>
      %574 = arith.addf %530, %573 : vector<16x128xf32>
      %575 = arith.addf %552, %574 : vector<16x128xf32>
      %576 = arith.negf %575 : vector<16x128xf32>
      %577 = math.exp %576 : vector<16x128xf32>
      %cst_122 = arith.constant 1.000000e+00 : f32
      %578 = vector.broadcast %cst_122 : f32 to vector<16x128xf32>
      %579 = arith.addf %578, %577 : vector<16x128xf32>
      %580 = arith.divf %578, %579 : vector<16x128xf32>
      %c0_123 = arith.constant 0 : index
      %c0_124 = arith.constant 0 : index
      %c0_125 = arith.constant 0 : index
      %581 = vector.load %arg5[%c0_123, %c0_124, %c0_125] : memref<1x16x128xf32, #tpu.memory_space<vmem>>, vector<1x16x128xf32>
      %582 = vector.shape_cast %581 : vector<1x16x128xf32> to vector<16x128xf32>
      %583 = vector.shape_cast %580 : vector<16x128xf32> to vector<1x16x128xf32>
      tpu.vector_store %arg5[%c0_123, %c0_124, %c0_125], %583 {strides = array<i32>} : memref<1x16x128xf32, #tpu.memory_space<vmem>>, vector<1x16x128xf32>,
    } else {
    }
    return
  }
  func.func @transform_0(%arg0: i32, %arg1: i32) -> i32 {
    %c0_i32 = arith.constant 0 : i32
    %c0_i32_0 = arith.constant 0 : i32
    return %c0_i32 : i32
  }
  func.func @transform_1(%arg0: i32, %arg1: i32) -> i32 {
    %c0_i32 = arith.constant 0 : i32
    %c0_i32_0 = arith.constant 0 : i32
    return %c0_i32 : i32
  }
  func.func @transform_2(%arg0: i32, %arg1: i32) -> (i32, i32, i32) {
    %c0_i32 = arith.constant 0 : i32
    %c0_i32_0 = arith.constant 0 : i32
    return %arg0, %arg1, %c0_i32 : i32, i32, i32
  }
  func.func @transform_3(%arg0: i32, %arg1: i32) -> (i32, i32, i32) {
    %c0_i32 = arith.constant 0 : i32
    %c0_i32_0 = arith.constant 0 : i32
    %c0_i32_1 = arith.constant 0 : i32
    return %arg0, %c0_i32, %c0_i32_0 : i32, i32, i32
  }
}

</mosaic_0001>

<llo_original>
// kernel: tpu_custom_call.1
$region0: #{tpu_custom_call.1}
  #allocation0 [shape = 'u32[]', space=smem, size = 0x4, offset = 0x4, fixed_abs, tag = 'smem constant byte address 0x4 - core index']
  #allocation1 [shape = 'u32[144,128]{1,0:T(1,128)}', space=vmem, size = 0x12000, scoped, tag = 'internal scratch']
  #allocation2 [shape = 'f32[2,8,256]{2,1,0:T(8,128)}', space=vmem, size = 0x4000, scoped, tag = 'scratch operand']
  #allocation3 [shape = 'f32[2,24,128]{2,1,0:T(8,128)}', space=vmem, size = 0x6000, scoped, tag = 'scratch operand']
  #allocation4 [shape = 'f32[1]{0:T(128)S(6)}', space=smem, size = 0x200, scoped, tag = 'scoped memory for tpu_custom_call.1']
  %s0 = inlined_call_operand.vmem [shape: f32[98], index: 0, kind: input, shape index: {}]
  %s1 = inlined_call_operand.<no memory space> [shape: f32[1], index: 1, kind: input, shape index: {}]
  %s2 = inlined_call_operand.hbm [shape: f32[2,4,256], index: 2, kind: input, shape index: {}]
  %s3 = inlined_call_operand.hbm [shape: f32[2,16,128], index: 3, kind: output, shape index: {}]
  %s4 = sld [smem:[#allocation0]]
  $region61: #{tpu_custom_call.1} parent=0
    _
  %s6 = ssub.s32 1, %s4
  %s7 = scalar_select 0, %s6, %s4
  %8 = sst [smem:[#allocation4]] %s1
  $region1: #{tpu_custom_call.1} parent=0
    #allocation5 [shape = 'u8[512]{0}', space=smem, size = 0x200, scoped, tag = 'input window, operand 0, single buffered']
    #allocation6 [shape = 's32[2]{0}', space=sflag, size = 0x8, scoped, tag = 'scoped memory for tpu_custom_call.1']
    #allocation7 [shape = 's32[2]{0}', space=sflag, size = 0x8, scoped, tag = 'scoped memory for tpu_custom_call.1']
    #allocation8 [shape = 's32[2]{0}', space=sflag, size = 0x8, scoped, tag = 'scoped memory for tpu_custom_call.1']
    #allocation9 [shape = 'u8[8192]{0}', space=vmem, size = 0x2000, scoped, tag = 'input window, operand 2']
    #allocation10 [shape = 'u8[16384]{0}', space=vmem, size = 0x4000, scoped, tag = 'output window, operand 0']
    %9 = vsyncpa [#allocation8], 0
    %10 = vsyncpa [#allocation6], 0
    %s11 = scalar_lea.sflag [#allocation6], 1
    %12 = vsyncpa %s11, 0
    %13 = vsyncpa [#allocation7], 0
    %s14 = scalar_lea.sflag [#allocation7], 1
    %15 = vsyncpa %s14, 0
    loop: start=0, step=1, limit=4
    $region2: #{tpu_custom_call.1} parent=1 // loop_pre_header
      _
    $region3: #{tpu_custom_call.1} parent=1 // loop_header
      %s17 = sphi 0, %s21
      %p18 = scmp.ge.s32.totalorder %s17, 4
      %s24 = sphi 0, %s36
      %s25 = sphi 0, %s32
      %s26 = sphi 0, %s24
      %s27 = sphi 0, %s25
      %s28 = sphi 0, %s26
      %s29 = sphi 0, %s27
      %s37 = sphi 0, %s37
      %s39 = sphi 0, %s37
      %s40 = sphi 0, %s39
      %s54 = sphi 0, %s40
      %s58 = sphi 0, %s58
      %s60 = sphi 0, %s58
      %s61 = sphi 0, %s60
      %s75 = sphi 0, %s61
      %s83 = sphi 0, %s85
      %s86 = sphi 0, %s83
      %s87 = sphi 0, %s86
      %s103 = sphi 0, %s87
      %s109 = sphi 0, %s111
      %s112 = sphi 0, %s109
      %s113 = sphi 0, %s112
      %s129 = sphi 0, %s113
    $region4: #{tpu_custom_call.1} parent=1 // loop_header_branch
      %20 = sbr.rel (%p18) target = $region8
    $region5: #{tpu_custom_call.1} parent=1 // loop_body
      %s22 = ssub.s32 %s17, 1
      %s23 = ssub.s32 %s17, 2
      %s30 = sadd.s32 1, %s25
      %p31 = scmp.ge.s32.totalorder %s30, 1
      %s32 = scalar_select %p31, 0, %s30
      %s33 = sadd.s32 1, %s24
      %s34 = scalar_select %p31, %s33, %s24
      %p35 = scmp.ge.s32.totalorder %s34, 2
      %s36 = scalar_select %p35, 0, %s34
      %s38 = sadd.s32 %s37, 1
      %p41 = scmp.eq.s32.totalorder %s17, 1
      %p42 = scmp.ne.s32.totalorder %s37, %s39
      %p43 = scmp.eq.s32.totalorder %s17, 0
      %p44 = por %p42, %p43
      %p45 = scmp.ne.s32.totalorder %s37, %s39
      %p46 = scmp.eq.s32.totalorder %s22, 1
      %p47 = por %p45, %p46
      %p48 = scmp.ne.s32.totalorder %s39, %s40
      %p49 = scmp.eq.s32.totalorder %s22, 0
      %p50 = por %p48, %p49
      %p51 = scmp.ne.s32.totalorder %s39, %s40
      %p52 = scmp.eq.s32.totalorder %s23, 1
      %p53 = por %p51, %p52
      %p55 = scmp.ne.s32.totalorder %s40, %s54
      %p56 = scmp.eq.s32.totalorder %s23, 0
      %p57 = por %p55, %p56
      %s59 = sadd.s32 %s58, 1
      %p62 = scmp.eq.s32.totalorder %s17, 1
      %p63 = scmp.ne.s32.totalorder %s58, %s60
      %p64 = scmp.eq.s32.totalorder %s17, 0
      %p65 = por %p63, %p64
      %p66 = scmp.ne.s32.totalorder %s58, %s60
      %p67 = scmp.eq.s32.totalorder %s22, 1
      %p68 = por %p66, %p67
      %p69 = scmp.ne.s32.totalorder %s60, %s61
      %p70 = scmp.eq.s32.totalorder %s22, 0
      %p71 = por %p69, %p70
      %p72 = scmp.ne.s32.totalorder %s60, %s61
      %p73 = scmp.eq.s32.totalorder %s23, 1
      %p74 = por %p72, %p73
      %p76 = scmp.ne.s32.totalorder %s61, %s75
      %p77 = scmp.eq.s32.totalorder %s23, 0
      %p78 = por %p76, %p77
      %s79 = ssub.s32 %s24, %s36
      %s80 = ssub.s32 %s25, %s32
      %s81 = sor.u32 %s79, %s80
      %p82 = scmp.eq.s32.totalorder %s81, 0
      %s84 = sadd.s32 %s83, 1
      %s85 = scalar_select %p82, %s83, %s84
      %p88 = pneg %p82
      %p89 = scmp.eq.s32.totalorder %s17, 1
      %p90 = por %p88, %p89
      %p91 = scmp.ne.s32.totalorder %s83, %s86
      %p92 = scmp.eq.s32.totalorder %s17, 0
      %p93 = por %p91, %p92
      %p94 = scmp.ne.s32.totalorder %s83, %s86
      %p95 = scmp.eq.s32.totalorder %s22, 1
      %p96 = por %p94, %p95
      %p97 = scmp.ne.s32.totalorder %s86, %s87
      %p98 = scmp.eq.s32.totalorder %s22, 0
      %p99 = por %p97, %p98
      %p100 = scmp.ne.s32.totalorder %s86, %s87
      %p101 = scmp.eq.s32.totalorder %s23, 1
      %p102 = por %p100, %p101
      %p104 = scmp.ne.s32.totalorder %s87, %s103
      %p105 = scmp.eq.s32.totalorder %s23, 0
      %p106 = por %p104, %p105
      %s107 = ssub.s32 %s24, %s36
      %p108 = scmp.eq.s32.totalorder %s107, 0
      %s110 = sadd.s32 %s109, 1
      %s111 = scalar_select %p108, %s109, %s110
      %p114 = pneg %p108
      %p115 = scmp.eq.s32.totalorder %s17, 1
      %p116 = por %p114, %p115
      %p117 = scmp.ne.s32.totalorder %s109, %s112
      %p118 = scmp.eq.s32.totalorder %s17, 0
      %p119 = por %p117, %p118
      %p120 = scmp.ne.s32.totalorder %s109, %s112
      %p121 = scmp.eq.s32.totalorder %s22, 1
      %p122 = por %p120, %p121
      %p123 = scmp.ne.s32.totalorder %s112, %s113
      %p124 = scmp.eq.s32.totalorder %s22, 0
      %p125 = por %p123, %p124
      %p126 = scmp.ne.s32.totalorder %s112, %s113
      %p127 = scmp.eq.s32.totalorder %s23, 1
      %p128 = por %p126, %p127
      %p130 = scmp.ne.s32.totalorder %s113, %s129
      %p131 = scmp.eq.s32.totalorder %s23, 0
      %p132 = por %p130, %p131
      %p133 = scmp.le.s32.totalorder 1, %s17
      %p134 = scmp.lt.s32.totalorder %s17, 3
      %p135 = pnand %p133, %p134
      %p136 = pneg %p135
      // Predicated region
      $region9: #{tpu_custom_call.1} parent=5 // pred_check
        _
      $region10: #{tpu_custom_call.1} parent=5 // pred_check_branch
        %138 = sbr.rel (%p135) target = $region12
      $region11: #{tpu_custom_call.1} parent=5 // pred_region
        %s139 = ssub.s32 %s17, 1
        // Predicated region
        $region13: #{tpu_custom_call.1} parent=11 // pred_check
          %p140 = pneg %p50
        $region14: #{tpu_custom_call.1} parent=11 // pred_check_branch
          %142 = sbr.rel (%p140) target = $region16
        $region15: #{tpu_custom_call.1} parent=11 // pred_region
          %s144 = ssub.s32 16, 16
          %145 = vsyncadd [#allocation8], %s144
          %s147 = sshll.u32 %s0, 4
          %s148 = int_to_ptr.vmem [resolvable:$true] %s147
          %150 = dma.vmem_to_smem %s148, 16, [#allocation5], [#allocation8]
        $region16: #{tpu_custom_call.1} parent=11 // pred_fallthru
          _
        // Predicated region
        $region17: #{tpu_custom_call.1} parent=11 // pred_check
          %p151 = pneg %p71
        $region18: #{tpu_custom_call.1} parent=11 // pred_check_branch
          %153 = sbr.rel (%p151) target = $region20
        $region19: #{tpu_custom_call.1} parent=11 // pred_region
          _
        $region20: #{tpu_custom_call.1} parent=11 // pred_fallthru
          _
      $region12: #{tpu_custom_call.1} parent=5 // pred_fallthru
        _
      %p154 = scmp.lt.s32.totalorder %s17, 2
      // Predicated region
      $region21: #{tpu_custom_call.1} parent=5 // pred_check
        %p155 = pneg %p154
      $region22: #{tpu_custom_call.1} parent=5 // pred_check_branch
        %157 = sbr.rel (%p155) target = $region24
      $region23: #{tpu_custom_call.1} parent=5 // pred_region
        // Predicated region
        $region25: #{tpu_custom_call.1} parent=23 // pred_check
          %p158 = pneg %p93
        $region26: #{tpu_custom_call.1} parent=23 // pred_check_branch
          %160 = sbr.rel (%p158) target = $region28
        $region27: #{tpu_custom_call.1} parent=23 // pred_region
          %s161 = sand.u32 %s83, 1
          %s162 = scalar_lea.sflag [#allocation6], %s161
          %s163 = sand.u32 %s83, 1
          %s164 = smul.addr %s163, 8
          %s165 = scalar_lea.vmem [#allocation9], %s164
          %s167 = ssub.s32 128, 128
          %168 = vsyncadd %s162, %s167
          %s169 = smul.addr %s25, 2
          %s170 = smul.addr %s24, 2
          %s171 = sadd.s32 %s169, %s170
          %s172 = smul.addr %s171, 64
          %s173 = scalar_lea.hbm %s2, %s172
          %s175 = sshll.u32 %s165, 4
          %s176 = int_to_ptr.vmem [resolvable:$true] %s175
          %178 = dma.hbm_to_vmem [thread:$0]  %s173, 128, %s176, %s162
        $region28: #{tpu_custom_call.1} parent=23 // pred_fallthru
          _
      $region24: #{tpu_custom_call.1} parent=5 // pred_fallthru
        _
      %p179 = scmp.le.s32.totalorder 1, %s17
      %p180 = scmp.lt.s32.totalorder %s17, 3
      %p181 = pnand %p179, %p180
      %p182 = pneg %p181
      // Predicated region
      $region29: #{tpu_custom_call.1} parent=5 // pred_check
        _
      $region30: #{tpu_custom_call.1} parent=5 // pred_check_branch
        %184 = sbr.rel (%p181) target = $region32
      $region31: #{tpu_custom_call.1} parent=5 // pred_region
        %s185 = ssub.s32 %s17, 1
        // Predicated region
        $region33: #{tpu_custom_call.1} parent=31 // pred_check
          %p186 = pneg %p50
        $region34: #{tpu_custom_call.1} parent=31 // pred_check_branch
          %188 = sbr.rel (%p186) target = $region36
        $region35: #{tpu_custom_call.1} parent=31 // pred_region
          %189 = dma.done [#allocation8], 16
        $region36: #{tpu_custom_call.1} parent=31 // pred_fallthru
          _
        %s190 = sand.u32 %s86, 1
        %s191 = scalar_lea.sflag [#allocation6], %s190
        %s192 = sand.u32 %s86, 1
        %s193 = smul.addr %s192, 8
        %s194 = scalar_lea.vmem [#allocation9], %s193
        // Predicated region
        $region37: #{tpu_custom_call.1} parent=31 // pred_check
          %p195 = pneg %p99
        $region38: #{tpu_custom_call.1} parent=31 // pred_check_branch
          %197 = sbr.rel (%p195) target = $region40
        $region39: #{tpu_custom_call.1} parent=31 // pred_region
          %198 = dma.done %s191, 128
        $region40: #{tpu_custom_call.1} parent=31 // pred_fallthru
          _
        %199 = sfence
        %p200 = pneg %p50
        %p201 = pneg %p47
        %p202 = pneg %p71
        %p203 = pneg %p68
        %s204 = sand.u32 %s86, 1
        %s205 = scalar_lea.sflag [#allocation6], %s204
        %s206 = sand.u32 %s86, 1
        %s207 = smul.addr %s206, 8
        %s208 = scalar_lea.vmem [#allocation9], %s207
        %p209 = pneg %p99
        %p210 = pneg %p96
        %p211 = pneg %p125
        %p212 = pneg %p122
        %s213 = sand.u32 %s112, 1
        %s214 = scalar_lea.sflag [#allocation7], %s213
        %s215 = sand.u32 %s112, 1
        %s216 = smul.addr %s215, 16
        %s217 = scalar_lea.vmem [#allocation10], %s216
        %p218 = scmp.eq.s32.totalorder %s27, 0
        // Predicated region
        $region41: #{tpu_custom_call.1} parent=31 // pred_check
          %p219 = pneg %p218
        $region42: #{tpu_custom_call.1} parent=31 // pred_check_branch
          %221 = sbr.rel (%p219) target = $region44
        $region43: #{tpu_custom_call.1} parent=31 // pred_region
          %222 = vst [vmem:[#allocation3] sm:$0xff] 0.0
          %223 = vst [vmem:[#allocation3 + $0x8] sm:$0xff] 0.0
          %224 = vst [vmem:[#allocation3 + $0x10] sm:$0xff] 0.0
          %225 = vst [vmem:[#allocation3 + $0x18] sm:$0xff] 0.0
          %226 = vst [vmem:[#allocation3 + $0x20] sm:$0xff] 0.0
          %227 = vst [vmem:[#allocation3 + $0x28] sm:$0xff] 0.0
        $region44: #{tpu_custom_call.1} parent=31 // pred_fallthru
          _
        %v228 = vld [vmem:[%s194] sm:$0xff]
        %v230 = vcombine.high %v228, %v228
        %vm232 = vcmask 1043456
        %v233 = vsel %vm232, %v228, 0.0
        %v234 = vsel %vm232, %v230, 0.0
        %v235 = vsel %vm232, %v228, -inf
        %v236 = vsel %vm232, %v230, -inf
        %v237 = vadd.f32 %v233, 0.0
        %v238 = vadd.f32 %v234, 0.0
        // Predicated region
        $region45: #{tpu_custom_call.1} parent=31 // pred_check
          %p239 = pneg %p218
        $region46: #{tpu_custom_call.1} parent=31 // pred_check_branch
          %241 = sbr.rel (%p239) target = $region48
        $region47: #{tpu_custom_call.1} parent=31 // pred_region
          %v242 = vrot.slane %v237, 4
          %v243 = vadd.f32 %v237, %v242
          %v244 = vrot.slane %v243, 2
          %v245 = vadd.f32 %v243, %v244
          %v246 = vrot.slane %v245, 1
          %v247 = vadd.f32 %v245, %v246
          %v248 = vrot.slane %v238, 4
          %v249 = vadd.f32 %v238, %v248
          %v250 = vrot.slane %v249, 2
          %v251 = vadd.f32 %v249, %v250
          %v252 = vrot.slane %v251, 1
          %v253 = vadd.f32 %v251, %v252
          %v254 = vmul.f32 %v247, 0.25
          %v255 = vmul.f32 %v253, 0.25
          %v256 = vrot.slane %v235, 4
          %v257 = vmax.f32 %v235, %v256
          %v258 = vrot.slane %v257, 2
          %v259 = vmax.f32 %v257, %v258
          %v260 = vrot.slane %v259, 1
          %v261 = vmax.f32 %v259, %v260
          %v262 = vrot.slane %v236, 4
          %v263 = vmax.f32 %v236, %v262
          %v264 = vrot.slane %v263, 2
          %v265 = vmax.f32 %v263, %v264
          %v266 = vrot.slane %v265, 1
          %v267 = vmax.f32 %v265, %v266
          %vm268 = vcmask 122880
          %269 = vst.msk [vmem:[#allocation3 + $0x3] sm:$0x1] %vm268, %v254
          %s270 = scalar_lea.vmem [#allocation3], 24
          %271 = vst.msk [vmem:[%s270 + $0x3] sm:$0x1] %vm268, %v261
          %273 = vrot.lane.b32.xlu0 %v254, 112
          %v274 = vpop.permute.xlu0 %273
          %276 = vst.msk [vmem:[#allocation3 + $0x4] sm:$0x1] %vm268, %v274
          %278 = vrot.lane.b32.xlu0 %v261, 112
          %v279 = vpop.permute.xlu0 %278
          %281 = vst.msk [vmem:[%s270 + $0x4] sm:$0x1] %vm268, %v279
          %282 = vrot.lane.b32.xlu0 %v254, 96
          %v283 = vpop.permute.xlu0 %282
          %285 = vst.msk [vmem:[#allocation3 + $0x5] sm:$0x1] %vm268, %v283
          %286 = vrot.lane.b32.xlu0 %v261, 96
          %v287 = vpop.permute.xlu0 %286
          %289 = vst.msk [vmem:[%s270 + $0x5] sm:$0x1] %vm268, %v287
          %290 = vrot.lane.b32.xlu0 %v254, 80
          %v291 = vpop.permute.xlu0 %290
          %293 = vst.msk [vmem:[#allocation3 + $0x6] sm:$0x1] %vm268, %v291
          %294 = vrot.lane.b32.xlu0 %v261, 80
          %v295 = vpop.permute.xlu0 %294
          %297 = vst.msk [vmem:[%s270 + $0x6] sm:$0x1] %vm268, %v295
          %298 = vrot.lane.b32.xlu0 %v254, 64
          %v299 = vpop.permute.xlu0 %298
          %301 = vst.msk [vmem:[#allocation3 + $0x7] sm:$0x1] %vm268, %v299
          %302 = vrot.lane.b32.xlu0 %v261, 64
          %v303 = vpop.permute.xlu0 %302
          %305 = vst.msk [vmem:[%s270 + $0x7] sm:$0x1] %vm268, %v303
          %306 = vrot.lane.b32.xlu0 %v254, 48
          %v307 = vpop.permute.xlu0 %306
          %309 = vst.msk [vmem:[#allocation3 + $0x8] sm:$0x1] %vm268, %v307
          %310 = vrot.lane.b32.xlu0 %v261, 48
          %v311 = vpop.permute.xlu0 %310
          %313 = vst.msk [vmem:[%s270 + $0x8] sm:$0x1] %vm268, %v311
          %314 = vrot.lane.b32.xlu0 %v254, 32
          %v315 = vpop.permute.xlu0 %314
          %317 = vst.msk [vmem:[#allocation3 + $0x9] sm:$0x1] %vm268, %v315
          %318 = vrot.lane.b32.xlu0 %v261, 32
          %v319 = vpop.permute.xlu0 %318
          %321 = vst.msk [vmem:[%s270 + $0x9] sm:$0x1] %vm268, %v319
          %322 = vrot.lane.b32.xlu0 %v254, 16
          %v323 = vpop.permute.xlu0 %322
          %325 = vst.msk [vmem:[#allocation3 + $0xa] sm:$0x1] %vm268, %v323
          %326 = vrot.lane.b32.xlu0 %v261, 16
          %v327 = vpop.permute.xlu0 %326
          %329 = vst.msk [vmem:[%s270 + $0xa] sm:$0x1] %vm268, %v327
          %330 = vst.msk [vmem:[#allocation3 + $0xb] sm:$0x1] %vm268, %v255
          %331 = vst.msk [vmem:[%s270 + $0xb] sm:$0x1] %vm268, %v267
          %333 = vrot.lane.b32.xlu0 %v255, 112
          %v334 = vpop.permute.xlu0 %333
          %336 = vst.msk [vmem:[#allocation3 + $0xc] sm:$0x1] %vm268, %v334
          %338 = vrot.lane.b32.xlu0 %v267, 112
          %v339 = vpop.permute.xlu0 %338
          %341 = vst.msk [vmem:[%s270 + $0xc] sm:$0x1] %vm268, %v339
          %342 = vrot.lane.b32.xlu0 %v255, 96
          %v343 = vpop.permute.xlu0 %342
          %345 = vst.msk [vmem:[#allocation3 + $0xd] sm:$0x1] %vm268, %v343
          %346 = vrot.lane.b32.xlu0 %v267, 96
          %v347 = vpop.permute.xlu0 %346
          %349 = vst.msk [vmem:[%s270 + $0xd] sm:$0x1] %vm268, %v347
          %350 = vrot.lane.b32.xlu0 %v255, 80
          %v351 = vpop.permute.xlu0 %350
          %353 = vst.msk [vmem:[#allocation3 + $0xe] sm:$0x1] %vm268, %v351
          %354 = vrot.lane.b32.xlu0 %v267, 80
          %v355 = vpop.permute.xlu0 %354
          %357 = vst.msk [vmem:[%s270 + $0xe] sm:$0x1] %vm268, %v355
          %358 = vrot.lane.b32.xlu0 %v255, 64
          %v359 = vpop.permute.xlu0 %358
          %361 = vst.msk [vmem:[#allocation3 + $0xf] sm:$0x1] %vm268, %v359
          %362 = vrot.lane.b32.xlu0 %v267, 64
          %v363 = vpop.permute.xlu0 %362
          %365 = vst.msk [vmem:[%s270 + $0xf] sm:$0x1] %vm268, %v363
          %366 = vrot.lane.b32.xlu0 %v255, 48
          %v367 = vpop.permute.xlu0 %366
          %369 = vst.msk [vmem:[#allocation3 + $0x10] sm:$0x1] %vm268, %v367
          %370 = vrot.lane.b32.xlu0 %v267, 48
          %v371 = vpop.permute.xlu0 %370
          %373 = vst.msk [vmem:[%s270 + $0x10] sm:$0x1] %vm268, %v371
          %374 = vrot.lane.b32.xlu0 %v255, 32
          %v375 = vpop.permute.xlu0 %374
          %377 = vst.msk [vmem:[#allocation3 + $0x11] sm:$0x1] %vm268, %v375
          %378 = vrot.lane.b32.xlu0 %v267, 32
          %v379 = vpop.permute.xlu0 %378
          %381 = vst.msk [vmem:[%s270 + $0x11] sm:$0x1] %vm268, %v379
          %382 = vrot.lane.b32.xlu0 %v255, 16
          %v383 = vpop.permute.xlu0 %382
          %385 = vst.msk [vmem:[#allocation3 + $0x12] sm:$0x1] %vm268, %v383
          %386 = vrot.lane.b32.xlu0 %v267, 16
          %v387 = vpop.permute.xlu0 %386
          %389 = vst.msk [vmem:[%s270 + $0x12] sm:$0x1] %vm268, %v387
          %s390 = sld [smem:[#allocation4]]
          %s391 = sld [smem:[#allocation5]]
          %s392 = sld [smem:[#allocation5 + $0x1]]
          %s393 = sld [smem:[#allocation5 + $0x2]]
          %s394 = sld [smem:[#allocation5 + $0x3]]
          %s395 = sld [smem:[#allocation5 + $0x4]]
          %s396 = sld [smem:[#allocation5 + $0x5]]
          %s397 = sld [smem:[#allocation5 + $0x6]]
          %s398 = sld [smem:[#allocation5 + $0x7]]
          %s399 = sld [smem:[#allocation5 + $0x8]]
          %s400 = sld [smem:[#allocation5 + $0x9]]
          %s401 = sld [smem:[#allocation5 + $0xa]]
          %s402 = sld [smem:[#allocation5 + $0xb]]
          %s403 = sld [smem:[#allocation5 + $0xc]]
          %s404 = sld [smem:[#allocation5 + $0xd]]
          %s405 = sld [smem:[#allocation5 + $0xe]]
          %s406 = sld [smem:[#allocation5 + $0xf]]
          %s407 = sld [smem:[#allocation5 + $0x10]]
          %s408 = sld [smem:[#allocation5 + $0x11]]
          %s409 = sld [smem:[#allocation5 + $0x12]]
          %s410 = sld [smem:[#allocation5 + $0x13]]
          %s411 = sld [smem:[#allocation5 + $0x14]]
          %s412 = sld [smem:[#allocation5 + $0x15]]
          %s413 = sld [smem:[#allocation5 + $0x16]]
          %s414 = sld [smem:[#allocation5 + $0x17]]
          %s415 = sld [smem:[#allocation5 + $0x18]]
          %s416 = sld [smem:[#allocation5 + $0x19]]
          %s417 = sld [smem:[#allocation5 + $0x1a]]
          %s418 = sld [smem:[#allocation5 + $0x1b]]
          %s419 = sld [smem:[#allocation5 + $0x1c]]
          %s420 = sld [smem:[#allocation5 + $0x1d]]
          %s421 = sld [smem:[#allocation5 + $0x1e]]
          %s422 = sld [smem:[#allocation5 + $0x1f]]
          %s423 = sld [smem:[#allocation5 + $0x20]]
          %s424 = sld [smem:[#allocation5 + $0x21]]
          %s425 = sld [smem:[#allocation5 + $0x22]]
          %s426 = sld [smem:[#allocation5 + $0x23]]
          %s427 = sld [smem:[#allocation5 + $0x24]]
          %s428 = sld [smem:[#allocation5 + $0x25]]
          %s429 = sld [smem:[#allocation5 + $0x26]]
          %s430 = sld [smem:[#allocation5 + $0x27]]
          %s431 = sld [smem:[#allocation5 + $0x28]]
          %s432 = sld [smem:[#allocation5 + $0x29]]
          %s433 = sld [smem:[#allocation5 + $0x2a]]
          %s434 = sld [smem:[#allocation5 + $0x2b]]
          %s435 = sld [smem:[#allocation5 + $0x2c]]
          %s436 = sld [smem:[#allocation5 + $0x2d]]
          %s437 = sld [smem:[#allocation5 + $0x2e]]
          %s438 = sld [smem:[#allocation5 + $0x2f]]
          %s439 = sld [smem:[#allocation5 + $0x30]]
          %s440 = sld [smem:[#allocation5 + $0x31]]
          %s441 = sld [smem:[#allocation5 + $0x32]]
          %s442 = sld [smem:[#allocation5 + $0x33]]
          %s443 = sld [smem:[#allocation5 + $0x34]]
          %s444 = sld [smem:[#allocation5 + $0x35]]
          %s445 = sld [smem:[#allocation5 + $0x36]]
          %s446 = sld [smem:[#allocation5 + $0x37]]
          %s447 = sld [smem:[#allocation5 + $0x38]]
          %s448 = sld [smem:[#allocation5 + $0x39]]
          %s449 = sld [smem:[#allocation5 + $0x3a]]
          %s450 = sld [smem:[#allocation5 + $0x3b]]
          %s451 = sld [smem:[#allocation5 + $0x3c]]
          %s452 = sld [smem:[#allocation5 + $0x3d]]
          %s453 = sld [smem:[#allocation5 + $0x3e]]
          %s454 = sld [smem:[#allocation5 + $0x3f]]
          %s455 = sld [smem:[#allocation5 + $0x40]]
          %s456 = sld [smem:[#allocation5 + $0x41]]
          %s457 = sld [smem:[#allocation5 + $0x42]]
          %s458 = sld [smem:[#allocation5 + $0x43]]
          %s459 = sld [smem:[#allocation5 + $0x44]]
          %s460 = sld [smem:[#allocation5 + $0x45]]
          %s461 = sld [smem:[#allocation5 + $0x46]]
          %s462 = sld [smem:[#allocation5 + $0x47]]
          %s463 = sld [smem:[#allocation5 + $0x48]]
          %s464 = sld [smem:[#allocation5 + $0x49]]
          %s465 = sld [smem:[#allocation5 + $0x4a]]
          %s466 = sld [smem:[#allocation5 + $0x4b]]
          %s467 = sld [smem:[#allocation5 + $0x4c]]
          %s468 = sld [smem:[#allocation5 + $0x4d]]
          %s469 = sld [smem:[#allocation5 + $0x4e]]
          %s470 = sld [smem:[#allocation5 + $0x4f]]
          %s471 = sld [smem:[#allocation5 + $0x50]]
          %s472 = sld [smem:[#allocation5 + $0x51]]
          %s473 = sld [smem:[#allocation5 + $0x52]]
          %s474 = sld [smem:[#allocation5 + $0x53]]
          %s475 = sld [smem:[#allocation5 + $0x54]]
          %s476 = sld [smem:[#allocation5 + $0x55]]
          %s477 = sld [smem:[#allocation5 + $0x56]]
          %s478 = sld [smem:[#allocation5 + $0x57]]
          %s479 = sld [smem:[#allocation5 + $0x58]]
          %s480 = sld [smem:[#allocation5 + $0x59]]
          %s481 = sld [smem:[#allocation5 + $0x5a]]
          %s482 = sld [smem:[#allocation5 + $0x5b]]
          %s483 = sld [smem:[#allocation5 + $0x5c]]
          %s484 = sld [smem:[#allocation5 + $0x5d]]
          %s485 = sld [smem:[#allocation5 + $0x5e]]
          %s486 = sld [smem:[#allocation5 + $0x5f]]
          %s487 = sld [smem:[#allocation5 + $0x60]]
          %s488 = sld [smem:[#allocation5 + $0x61]]
          %v489 = vstv %s390
          %v490 = vld [vmem:[#allocation3] sm:$0xff]
          %v491 = vld [vmem:[#allocation3 + $0x8] sm:$0xff]
          %v492 = vld [vmem:[#allocation3 + $0x10] sm:$0xff]
          %493 = vrot.lane.b32.xlu0 %v490, 3
          %v494 = vpop.permute.xlu0 %493
          %495 = vrot.lane.b32.xlu0 %v491, 3
          %v496 = vpop.permute.xlu0 %495
          %497 = vrot.lane.b32.xlu0 %v492, 3
          %v498 = vpop.permute.xlu0 %497
          %499 = vrot.lane.b32.xlu0 %v490, 2
          %v500 = vpop.permute.xlu0 %499
          %501 = vrot.lane.b32.xlu0 %v491, 2
          %v502 = vpop.permute.xlu0 %501
          %503 = vrot.lane.b32.xlu0 %v492, 2
          %v504 = vpop.permute.xlu0 %503
          %505 = vrot.lane.b32.xlu0 %v490, 1
          %v506 = vpop.permute.xlu0 %505
          %507 = vrot.lane.b32.xlu0 %v491, 1
          %v508 = vpop.permute.xlu0 %507
          %509 = vrot.lane.b32.xlu0 %v492, 1
          %v510 = vpop.permute.xlu0 %509
          %511 = vrot.lane.b32.xlu0 %v490, 127
          %v512 = vpop.permute.xlu0 %511
          %513 = vrot.lane.b32.xlu0 %v491, 127
          %v514 = vpop.permute.xlu0 %513
          %515 = vrot.lane.b32.xlu0 %v492, 127
          %v516 = vpop.permute.xlu0 %515
          %517 = vrot.lane.b32.xlu0 %v490, 126
          %v518 = vpop.permute.xlu0 %517
          %519 = vrot.lane.b32.xlu0 %v491, 126
          %v520 = vpop.permute.xlu0 %519
          %521 = vrot.lane.b32.xlu0 %v492, 126
          %v522 = vpop.permute.xlu0 %521
          %523 = vrot.lane.b32.xlu0 %v490, 125
          %v524 = vpop.permute.xlu0 %523
          %525 = vrot.lane.b32.xlu0 %v491, 125
          %v526 = vpop.permute.xlu0 %525
          %527 = vrot.lane.b32.xlu0 %v492, 125
          %v528 = vpop.permute.xlu0 %527
          %v529 = vstv %s391
          %v530 = vmul.f32 %v494, %v529
          %v531 = vmul.f32 %v496, %v529
          %v532 = vstv %s392
          %v533 = vmul.f32 %v500, %v532
          %v534 = vmul.f32 %v502, %v532
          %v535 = vadd.f32 %v530, %v533
          %v536 = vadd.f32 %v531, %v534
          %v537 = vstv %s393
          %v538 = vmul.f32 %v506, %v537
          %v539 = vmul.f32 %v508, %v537
          %v540 = vadd.f32 %v535, %v538
          %v541 = vadd.f32 %v536, %v539
          %v542 = vstv %s394
          %v543 = vmul.f32 %v490, %v542
          %v544 = vmul.f32 %v491, %v542
          %v545 = vadd.f32 %v540, %v543
          %v546 = vadd.f32 %v541, %v544
          %v547 = vstv %s395
          %v548 = vmul.f32 %v512, %v547
          %v549 = vmul.f32 %v514, %v547
          %v550 = vadd.f32 %v545, %v548
          %v551 = vadd.f32 %v546, %v549
          %v552 = vstv %s396
          %v553 = vmul.f32 %v518, %v552
          %v554 = vmul.f32 %v520, %v552
          %v555 = vadd.f32 %v550, %v553
          %v556 = vadd.f32 %v551, %v554
          %v557 = vstv %s397
          %v558 = vmul.f32 %v524, %v557
          %v559 = vmul.f32 %v526, %v557
          %v560 = vadd.f32 %v555, %v558
          %v561 = vadd.f32 %v556, %v559
          %v562 = vadd.f32 %v489, %v560
          %v563 = vadd.f32 %v489, %v561
          %v564 = vstv %s398
          %v565 = vmul.f32 %v494, %v564
          %v566 = vmul.f32 %v496, %v564
          %v567 = vmul.f32 %v498, %v564
          %v568 = vstv %s399
          %v569 = vmul.f32 %v500, %v568
          %v570 = vmul.f32 %v502, %v568
          %v571 = vmul.f32 %v504, %v568
          %v572 = vadd.f32 %v565, %v569
          %v573 = vadd.f32 %v566, %v570
          %v574 = vadd.f32 %v567, %v571
          %v575 = vstv %s400
          %v576 = vmul.f32 %v506, %v575
          %v577 = vmul.f32 %v508, %v575
          %v578 = vmul.f32 %v510, %v575
          %v579 = vadd.f32 %v572, %v576
          %v580 = vadd.f32 %v573, %v577
          %v581 = vadd.f32 %v574, %v578
          %v582 = vstv %s401
          %v583 = vmul.f32 %v490, %v582
          %v584 = vmul.f32 %v491, %v582
          %v585 = vmul.f32 %v492, %v582
          %v586 = vadd.f32 %v579, %v583
          %v587 = vadd.f32 %v580, %v584
          %v588 = vadd.f32 %v581, %v585
          %v589 = vstv %s402
          %v590 = vmul.f32 %v512, %v589
          %v591 = vmul.f32 %v514, %v589
          %v592 = vmul.f32 %v516, %v589
          %v593 = vadd.f32 %v586, %v590
          %v594 = vadd.f32 %v587, %v591
          %v595 = vadd.f32 %v588, %v592
          %v596 = vstv %s403
          %v597 = vmul.f32 %v518, %v596
          %v598 = vmul.f32 %v520, %v596
          %v599 = vmul.f32 %v522, %v596
          %v600 = vadd.f32 %v593, %v597
          %v601 = vadd.f32 %v594, %v598
          %v602 = vadd.f32 %v595, %v599
          %v603 = vstv %s404
          %v604 = vmul.f32 %v524, %v603
          %v605 = vmul.f32 %v526, %v603
          %v606 = vmul.f32 %v528, %v603
          %v607 = vadd.f32 %v600, %v604
          %v608 = vadd.f32 %v601, %v605
          %v609 = vadd.f32 %v602, %v606
          %v610 = vadd.f32 %v607, 0.0
          %v611 = vadd.f32 %v608, 0.0
          %v612 = vadd.f32 %v609, 0.0
          %v613 = vstv %s405
          %v614 = vmul.f32 %v494, %v613
          %v615 = vmul.f32 %v496, %v613
          %v616 = vmul.f32 %v498, %v613
          %v617 = vstv %s406
          %v618 = vmul.f32 %v500, %v617
          %v619 = vmul.f32 %v502, %v617
          %v620 = vmul.f32 %v504, %v617
          %v621 = vadd.f32 %v614, %v618
          %v622 = vadd.f32 %v615, %v619
          %v623 = vadd.f32 %v616, %v620
          %v624 = vstv %s407
          %v625 = vmul.f32 %v506, %v624
          %v626 = vmul.f32 %v508, %v624
          %v627 = vmul.f32 %v510, %v624
          %v628 = vadd.f32 %v621, %v625
          %v629 = vadd.f32 %v622, %v626
          %v630 = vadd.f32 %v623, %v627
          %v631 = vstv %s408
          %v632 = vmul.f32 %v490, %v631
          %v633 = vmul.f32 %v491, %v631
          %v634 = vmul.f32 %v492, %v631
          %v635 = vadd.f32 %v628, %v632
          %v636 = vadd.f32 %v629, %v633
          %v637 = vadd.f32 %v630, %v634
          %v638 = vstv %s409
          %v639 = vmul.f32 %v512, %v638
          %v640 = vmul.f32 %v514, %v638
          %v641 = vmul.f32 %v516, %v638
          %v642 = vadd.f32 %v635, %v639
          %v643 = vadd.f32 %v636, %v640
          %v644 = vadd.f32 %v637, %v641
          %v645 = vstv %s410
          %v646 = vmul.f32 %v518, %v645
          %v647 = vmul.f32 %v520, %v645
          %v648 = vmul.f32 %v522, %v645
          %v649 = vadd.f32 %v642, %v646
          %v650 = vadd.f32 %v643, %v647
          %v651 = vadd.f32 %v644, %v648
          %v652 = vstv %s411
          %v653 = vmul.f32 %v524, %v652
          %v654 = vmul.f32 %v526, %v652
          %v655 = vmul.f32 %v528, %v652
          %v656 = vadd.f32 %v649, %v653
          %v657 = vadd.f32 %v650, %v654
          %v658 = vadd.f32 %v651, %v655
          %vm662 = vcmask 1045504
          %v663 = vrot.slane %v656, 2
          %v664 = vrot.slane %v657, 2
          %v665 = vsel %vm662, %v663, %v664
          %v666 = vrot.slane %v658, 2
          %v667 = vsel %vm662, %v664, %v666
          %v670 = vadd.f32 %v562, %v665
          %v671 = vadd.f32 %v563, %v667
          %v672 = vstv %s412
          %v673 = vmul.f32 %v494, %v672
          %v674 = vmul.f32 %v496, %v672
          %v675 = vmul.f32 %v498, %v672
          %v676 = vstv %s413
          %v677 = vmul.f32 %v500, %v676
          %v678 = vmul.f32 %v502, %v676
          %v679 = vmul.f32 %v504, %v676
          %v680 = vadd.f32 %v673, %v677
          %v681 = vadd.f32 %v674, %v678
          %v682 = vadd.f32 %v675, %v679
          %v683 = vstv %s414
          %v684 = vmul.f32 %v506, %v683
          %v685 = vmul.f32 %v508, %v683
          %v686 = vmul.f32 %v510, %v683
          %v687 = vadd.f32 %v680, %v684
          %v688 = vadd.f32 %v681, %v685
          %v689 = vadd.f32 %v682, %v686
          %v690 = vstv %s415
          %v691 = vmul.f32 %v490, %v690
          %v692 = vmul.f32 %v491, %v690
          %v693 = vmul.f32 %v492, %v690
          %v694 = vadd.f32 %v687, %v691
          %v695 = vadd.f32 %v688, %v692
          %v696 = vadd.f32 %v689, %v693
          %v697 = vstv %s416
          %v698 = vmul.f32 %v512, %v697
          %v699 = vmul.f32 %v514, %v697
          %v700 = vmul.f32 %v516, %v697
          %v701 = vadd.f32 %v694, %v698
          %v702 = vadd.f32 %v695, %v699
          %v703 = vadd.f32 %v696, %v700
          %v704 = vstv %s417
          %v705 = vmul.f32 %v518, %v704
          %v706 = vmul.f32 %v520, %v704
          %v707 = vmul.f32 %v522, %v704
          %v708 = vadd.f32 %v701, %v705
          %v709 = vadd.f32 %v702, %v706
          %v710 = vadd.f32 %v703, %v707
          %v711 = vstv %s418
          %v712 = vmul.f32 %v524, %v711
          %v713 = vmul.f32 %v526, %v711
          %v714 = vmul.f32 %v528, %v711
          %v715 = vadd.f32 %v708, %v712
          %v716 = vadd.f32 %v709, %v713
          %v717 = vadd.f32 %v710, %v714
          %v721 = vrot.slane %v715, 2
          %v722 = vrot.slane %v716, 2
          %v723 = vsel %vm662, %v721, %v722
          %v724 = vrot.slane %v717, 2
          %v725 = vsel %vm662, %v722, %v724
          %v729 = vadd.f32 %v610, %v723
          %v730 = vadd.f32 %v611, %v725
          %v731 = vadd.f32 %v612, %v724
          %v732 = vstv %s419
          %v733 = vmul.f32 %v494, %v732
          %v734 = vmul.f32 %v496, %v732
          %v735 = vmul.f32 %v498, %v732
          %v736 = vstv %s420
          %v737 = vmul.f32 %v500, %v736
          %v738 = vmul.f32 %v502, %v736
          %v739 = vmul.f32 %v504, %v736
          %v740 = vadd.f32 %v733, %v737
          %v741 = vadd.f32 %v734, %v738
          %v742 = vadd.f32 %v735, %v739
          %v743 = vstv %s421
          %v744 = vmul.f32 %v506, %v743
          %v745 = vmul.f32 %v508, %v743
          %v746 = vmul.f32 %v510, %v743
          %v747 = vadd.f32 %v740, %v744
          %v748 = vadd.f32 %v741, %v745
          %v749 = vadd.f32 %v742, %v746
          %v750 = vstv %s422
          %v751 = vmul.f32 %v490, %v750
          %v752 = vmul.f32 %v491, %v750
          %v753 = vmul.f32 %v492, %v750
          %v754 = vadd.f32 %v747, %v751
          %v755 = vadd.f32 %v748, %v752
          %v756 = vadd.f32 %v749, %v753
          %v757 = vstv %s423
          %v758 = vmul.f32 %v512, %v757
          %v759 = vmul.f32 %v514, %v757
          %v760 = vmul.f32 %v516, %v757
          %v761 = vadd.f32 %v754, %v758
          %v762 = vadd.f32 %v755, %v759
          %v763 = vadd.f32 %v756, %v760
          %v764 = vstv %s424
          %v765 = vmul.f32 %v518, %v764
          %v766 = vmul.f32 %v520, %v764
          %v767 = vmul.f32 %v522, %v764
          %v768 = vadd.f32 %v761, %v765
          %v769 = vadd.f32 %v762, %v766
          %v770 = vadd.f32 %v763, %v767
          %v771 = vstv %s425
          %v772 = vmul.f32 %v524, %v771
          %v773 = vmul.f32 %v526, %v771
          %v774 = vmul.f32 %v528, %v771
          %v775 = vadd.f32 %v768, %v772
          %v776 = vadd.f32 %v769, %v773
          %v777 = vadd.f32 %v770, %v774
          %v781 = vrot.slane %v775, 4
          %v782 = vrot.slane %v776, 4
          %v783 = vsel %vm232, %v781, %v782
          %v784 = vrot.slane %v777, 4
          %v785 = vsel %vm232, %v782, %v784
          %v788 = vadd.f32 %v670, %v783
          %v789 = vadd.f32 %v671, %v785
          %v790 = vstv %s426
          %v791 = vmul.f32 %v494, %v790
          %v792 = vmul.f32 %v496, %v790
          %v793 = vmul.f32 %v498, %v790
          %v794 = vstv %s427
          %v795 = vmul.f32 %v500, %v794
          %v796 = vmul.f32 %v502, %v794
          %v797 = vmul.f32 %v504, %v794
          %v798 = vadd.f32 %v791, %v795
          %v799 = vadd.f32 %v792, %v796
          %v800 = vadd.f32 %v793, %v797
          %v801 = vstv %s428
          %v802 = vmul.f32 %v506, %v801
          %v803 = vmul.f32 %v508, %v801
          %v804 = vmul.f32 %v510, %v801
          %v805 = vadd.f32 %v798, %v802
          %v806 = vadd.f32 %v799, %v803
          %v807 = vadd.f32 %v800, %v804
          %v808 = vstv %s429
          %v809 = vmul.f32 %v490, %v808
          %v810 = vmul.f32 %v491, %v808
          %v811 = vmul.f32 %v492, %v808
          %v812 = vadd.f32 %v805, %v809
          %v813 = vadd.f32 %v806, %v810
          %v814 = vadd.f32 %v807, %v811
          %v815 = vstv %s430
          %v816 = vmul.f32 %v512, %v815
          %v817 = vmul.f32 %v514, %v815
          %v818 = vmul.f32 %v516, %v815
          %v819 = vadd.f32 %v812, %v816
          %v820 = vadd.f32 %v813, %v817
          %v821 = vadd.f32 %v814, %v818
          %v822 = vstv %s431
          %v823 = vmul.f32 %v518, %v822
          %v824 = vmul.f32 %v520, %v822
          %v825 = vmul.f32 %v522, %v822
          %v826 = vadd.f32 %v819, %v823
          %v827 = vadd.f32 %v820, %v824
          %v828 = vadd.f32 %v821, %v825
          %v829 = vstv %s432
          %v830 = vmul.f32 %v524, %v829
          %v831 = vmul.f32 %v526, %v829
          %v832 = vmul.f32 %v528, %v829
          %v833 = vadd.f32 %v826, %v830
          %v834 = vadd.f32 %v827, %v831
          %v835 = vadd.f32 %v828, %v832
          %v839 = vrot.slane %v833, 4
          %v840 = vrot.slane %v834, 4
          %v841 = vsel %vm232, %v839, %v840
          %v842 = vrot.slane %v835, 4
          %v843 = vsel %vm232, %v840, %v842
          %v847 = vadd.f32 %v729, %v841
          %v848 = vadd.f32 %v730, %v843
          %v849 = vadd.f32 %v731, %v842
          %v850 = vstv %s433
          %v851 = vmul.f32 %v494, %v850
          %v852 = vmul.f32 %v496, %v850
          %v853 = vmul.f32 %v498, %v850
          %v854 = vstv %s434
          %v855 = vmul.f32 %v500, %v854
          %v856 = vmul.f32 %v502, %v854
          %v857 = vmul.f32 %v504, %v854
          %v858 = vadd.f32 %v851, %v855
          %v859 = vadd.f32 %v852, %v856
          %v860 = vadd.f32 %v853, %v857
          %v861 = vstv %s435
          %v862 = vmul.f32 %v506, %v861
          %v863 = vmul.f32 %v508, %v861
          %v864 = vmul.f32 %v510, %v861
          %v865 = vadd.f32 %v858, %v862
          %v866 = vadd.f32 %v859, %v863
          %v867 = vadd.f32 %v860, %v864
          %v868 = vstv %s436
          %v869 = vmul.f32 %v490, %v868
          %v870 = vmul.f32 %v491, %v868
          %v871 = vmul.f32 %v492, %v868
          %v872 = vadd.f32 %v865, %v869
          %v873 = vadd.f32 %v866, %v870
          %v874 = vadd.f32 %v867, %v871
          %v875 = vstv %s437
          %v876 = vmul.f32 %v512, %v875
          %v877 = vmul.f32 %v514, %v875
          %v878 = vmul.f32 %v516, %v875
          %v879 = vadd.f32 %v872, %v876
          %v880 = vadd.f32 %v873, %v877
          %v881 = vadd.f32 %v874, %v878
          %v882 = vstv %s438
          %v883 = vmul.f32 %v518, %v882
          %v884 = vmul.f32 %v520, %v882
          %v885 = vmul.f32 %v522, %v882
          %v886 = vadd.f32 %v879, %v883
          %v887 = vadd.f32 %v880, %v884
          %v888 = vadd.f32 %v881, %v885
          %v889 = vstv %s439
          %v890 = vmul.f32 %v524, %v889
          %v891 = vmul.f32 %v526, %v889
          %v892 = vmul.f32 %v528, %v889
          %v893 = vadd.f32 %v886, %v890
          %v894 = vadd.f32 %v887, %v891
          %v895 = vadd.f32 %v888, %v892
          %vm899 = vcmask 1041408
          %v900 = vrot.slane %v893, 6
          %v901 = vrot.slane %v894, 6
          %v902 = vsel %vm899, %v900, %v901
          %v903 = vrot.slane %v895, 6
          %v904 = vsel %vm899, %v901, %v903
          %v907 = vadd.f32 %v788, %v902
          %v908 = vadd.f32 %v789, %v904
          %v909 = vld [vmem:[%s270] sm:$0xff]
          %v910 = vld [vmem:[%s270 + $0x8] sm:$0xff]
          %v911 = vld [vmem:[%s270 + $0x10] sm:$0xff]
          %912 = vrot.lane.b32.xlu0 %v909, 3
          %v913 = vpop.permute.xlu0 %912
          %914 = vrot.lane.b32.xlu0 %v910, 3
          %v915 = vpop.permute.xlu0 %914
          %916 = vrot.lane.b32.xlu0 %v911, 3
          %v917 = vpop.permute.xlu0 %916
          %918 = vrot.lane.b32.xlu0 %v909, 2
          %v919 = vpop.permute.xlu0 %918
          %920 = vrot.lane.b32.xlu0 %v910, 2
          %v921 = vpop.permute.xlu0 %920
          %922 = vrot.lane.b32.xlu0 %v911, 2
          %v923 = vpop.permute.xlu0 %922
          %924 = vrot.lane.b32.xlu0 %v909, 1
          %v925 = vpop.permute.xlu0 %924
          %926 = vrot.lane.b32.xlu0 %v910, 1
          %v927 = vpop.permute.xlu0 %926
          %928 = vrot.lane.b32.xlu0 %v911, 1
          %v929 = vpop.permute.xlu0 %928
          %930 = vrot.lane.b32.xlu0 %v909, 127
          %v931 = vpop.permute.xlu0 %930
          %932 = vrot.lane.b32.xlu0 %v910, 127
          %v933 = vpop.permute.xlu0 %932
          %934 = vrot.lane.b32.xlu0 %v911, 127
          %v935 = vpop.permute.xlu0 %934
          %936 = vrot.lane.b32.xlu0 %v909, 126
          %v937 = vpop.permute.xlu0 %936
          %938 = vrot.lane.b32.xlu0 %v910, 126
          %v939 = vpop.permute.xlu0 %938
          %940 = vrot.lane.b32.xlu0 %v911, 126
          %v941 = vpop.permute.xlu0 %940
          %942 = vrot.lane.b32.xlu0 %v909, 125
          %v943 = vpop.permute.xlu0 %942
          %944 = vrot.lane.b32.xlu0 %v910, 125
          %v945 = vpop.permute.xlu0 %944
          %946 = vrot.lane.b32.xlu0 %v911, 125
          %v947 = vpop.permute.xlu0 %946
          %v948 = vstv %s440
          %v949 = vmul.f32 %v913, %v948
          %v950 = vmul.f32 %v915, %v948
          %v951 = vstv %s441
          %v952 = vmul.f32 %v919, %v951
          %v953 = vmul.f32 %v921, %v951
          %v954 = vadd.f32 %v949, %v952
          %v955 = vadd.f32 %v950, %v953
          %v956 = vstv %s442
          %v957 = vmul.f32 %v925, %v956
          %v958 = vmul.f32 %v927, %v956
          %v959 = vadd.f32 %v954, %v957
          %v960 = vadd.f32 %v955, %v958
          %v961 = vstv %s443
          %v962 = vmul.f32 %v909, %v961
          %v963 = vmul.f32 %v910, %v961
          %v964 = vadd.f32 %v959, %v962
          %v965 = vadd.f32 %v960, %v963
          %v966 = vstv %s444
          %v967 = vmul.f32 %v931, %v966
          %v968 = vmul.f32 %v933, %v966
          %v969 = vadd.f32 %v964, %v967
          %v970 = vadd.f32 %v965, %v968
          %v971 = vstv %s445
          %v972 = vmul.f32 %v937, %v971
          %v973 = vmul.f32 %v939, %v971
          %v974 = vadd.f32 %v969, %v972
          %v975 = vadd.f32 %v970, %v973
          %v976 = vstv %s446
          %v977 = vmul.f32 %v943, %v976
          %v978 = vmul.f32 %v945, %v976
          %v979 = vadd.f32 %v974, %v977
          %v980 = vadd.f32 %v975, %v978
          %vm983 = vcmask 1040384
          %v984 = vrot.slane %v979, 7
          %v985 = vrot.slane %v980, 7
          %v986 = vsel %vm983, %v984, %v985
          %v990 = vadd.f32 %v847, %v984
          %v991 = vadd.f32 %v848, %v986
          %v992 = vadd.f32 %v849, %v985
          %v993 = vstv %s447
          %v994 = vmul.f32 %v913, %v993
          %v995 = vmul.f32 %v915, %v993
          %v996 = vmul.f32 %v917, %v993
          %v997 = vstv %s448
          %v998 = vmul.f32 %v919, %v997
          %v999 = vmul.f32 %v921, %v997
          %v1000 = vmul.f32 %v923, %v997
          %v1001 = vadd.f32 %v994, %v998
          %v1002 = vadd.f32 %v995, %v999
          %v1003 = vadd.f32 %v996, %v1000
          %v1004 = vstv %s449
          %v1005 = vmul.f32 %v925, %v1004
          %v1006 = vmul.f32 %v927, %v1004
          %v1007 = vmul.f32 %v929, %v1004
          %v1008 = vadd.f32 %v1001, %v1005
          %v1009 = vadd.f32 %v1002, %v1006
          %v1010 = vadd.f32 %v1003, %v1007
          %v1011 = vstv %s450
          %v1012 = vmul.f32 %v909, %v1011
          %v1013 = vmul.f32 %v910, %v1011
          %v1014 = vmul.f32 %v911, %v1011
          %v1015 = vadd.f32 %v1008, %v1012
          %v1016 = vadd.f32 %v1009, %v1013
          %v1017 = vadd.f32 %v1010, %v1014
          %v1018 = vstv %s451
          %v1019 = vmul.f32 %v931, %v1018
          %v1020 = vmul.f32 %v933, %v1018
          %v1021 = vmul.f32 %v935, %v1018
          %v1022 = vadd.f32 %v1015, %v1019
          %v1023 = vadd.f32 %v1016, %v1020
          %v1024 = vadd.f32 %v1017, %v1021
          %v1025 = vstv %s452
          %v1026 = vmul.f32 %v937, %v1025
          %v1027 = vmul.f32 %v939, %v1025
          %v1028 = vmul.f32 %v941, %v1025
          %v1029 = vadd.f32 %v1022, %v1026
          %v1030 = vadd.f32 %v1023, %v1027
          %v1031 = vadd.f32 %v1024, %v1028
          %v1032 = vstv %s453
          %v1033 = vmul.f32 %v943, %v1032
          %v1034 = vmul.f32 %v945, %v1032
          %v1035 = vmul.f32 %v947, %v1032
          %v1036 = vadd.f32 %v1029, %v1033
          %v1037 = vadd.f32 %v1030, %v1034
          %v1038 = vadd.f32 %v1031, %v1035
          %vm1042 = vcmask 1046528
          %v1043 = vrot.slane %v1036, 1
          %v1044 = vrot.slane %v1037, 1
          %v1045 = vsel %vm1042, %v1043, %v1044
          %v1046 = vrot.slane %v1038, 1
          %v1047 = vsel %vm1042, %v1044, %v1046
          %v1050 = vadd.f32 %v907, %v1045
          %v1051 = vadd.f32 %v908, %v1047
          %v1052 = vstv %s454
          %v1053 = vmul.f32 %v913, %v1052
          %v1054 = vmul.f32 %v915, %v1052
          %v1055 = vmul.f32 %v917, %v1052
          %v1056 = vstv %s455
          %v1057 = vmul.f32 %v919, %v1056
          %v1058 = vmul.f32 %v921, %v1056
          %v1059 = vmul.f32 %v923, %v1056
          %v1060 = vadd.f32 %v1053, %v1057
          %v1061 = vadd.f32 %v1054, %v1058
          %v1062 = vadd.f32 %v1055, %v1059
          %v1063 = vstv %s456
          %v1064 = vmul.f32 %v925, %v1063
          %v1065 = vmul.f32 %v927, %v1063
          %v1066 = vmul.f32 %v929, %v1063
          %v1067 = vadd.f32 %v1060, %v1064
          %v1068 = vadd.f32 %v1061, %v1065
          %v1069 = vadd.f32 %v1062, %v1066
          %v1070 = vstv %s457
          %v1071 = vmul.f32 %v909, %v1070
          %v1072 = vmul.f32 %v910, %v1070
          %v1073 = vmul.f32 %v911, %v1070
          %v1074 = vadd.f32 %v1067, %v1071
          %v1075 = vadd.f32 %v1068, %v1072
          %v1076 = vadd.f32 %v1069, %v1073
          %v1077 = vstv %s458
          %v1078 = vmul.f32 %v931, %v1077
          %v1079 = vmul.f32 %v933, %v1077
          %v1080 = vmul.f32 %v935, %v1077
          %v1081 = vadd.f32 %v1074, %v1078
          %v1082 = vadd.f32 %v1075, %v1079
          %v1083 = vadd.f32 %v1076, %v1080
          %v1084 = vstv %s459
          %v1085 = vmul.f32 %v937, %v1084
          %v1086 = vmul.f32 %v939, %v1084
          %v1087 = vmul.f32 %v941, %v1084
          %v1088 = vadd.f32 %v1081, %v1085
          %v1089 = vadd.f32 %v1082, %v1086
          %v1090 = vadd.f32 %v1083, %v1087
          %v1091 = vstv %s460
          %v1092 = vmul.f32 %v943, %v1091
          %v1093 = vmul.f32 %v945, %v1091
          %v1094 = vmul.f32 %v947, %v1091
          %v1095 = vadd.f32 %v1088, %v1092
          %v1096 = vadd.f32 %v1089, %v1093
          %v1097 = vadd.f32 %v1090, %v1094
          %v1101 = vrot.slane %v1095, 1
          %v1102 = vrot.slane %v1096, 1
          %v1103 = vsel %vm1042, %v1101, %v1102
          %v1104 = vrot.slane %v1097, 1
          %v1105 = vsel %vm1042, %v1102, %v1104
          %v1109 = vadd.f32 %v990, %v1103
          %v1110 = vadd.f32 %v991, %v1105
          %v1111 = vadd.f32 %v992, %v1104
          %v1112 = vstv %s461
          %v1113 = vmul.f32 %v913, %v1112
          %v1114 = vmul.f32 %v915, %v1112
          %v1115 = vmul.f32 %v917, %v1112
          %v1116 = vstv %s462
          %v1117 = vmul.f32 %v919, %v1116
          %v1118 = vmul.f32 %v921, %v1116
          %v1119 = vmul.f32 %v923, %v1116
          %v1120 = vadd.f32 %v1113, %v1117
          %v1121 = vadd.f32 %v1114, %v1118
          %v1122 = vadd.f32 %v1115, %v1119
          %v1123 = vstv %s463
          %v1124 = vmul.f32 %v925, %v1123
          %v1125 = vmul.f32 %v927, %v1123
          %v1126 = vmul.f32 %v929, %v1123
          %v1127 = vadd.f32 %v1120, %v1124
          %v1128 = vadd.f32 %v1121, %v1125
          %v1129 = vadd.f32 %v1122, %v1126
          %v1130 = vstv %s464
          %v1131 = vmul.f32 %v909, %v1130
          %v1132 = vmul.f32 %v910, %v1130
          %v1133 = vmul.f32 %v911, %v1130
          %v1134 = vadd.f32 %v1127, %v1131
          %v1135 = vadd.f32 %v1128, %v1132
          %v1136 = vadd.f32 %v1129, %v1133
          %v1137 = vstv %s465
          %v1138 = vmul.f32 %v931, %v1137
          %v1139 = vmul.f32 %v933, %v1137
          %v1140 = vmul.f32 %v935, %v1137
          %v1141 = vadd.f32 %v1134, %v1138
          %v1142 = vadd.f32 %v1135, %v1139
          %v1143 = vadd.f32 %v1136, %v1140
          %v1144 = vstv %s466
          %v1145 = vmul.f32 %v937, %v1144
          %v1146 = vmul.f32 %v939, %v1144
          %v1147 = vmul.f32 %v941, %v1144
          %v1148 = vadd.f32 %v1141, %v1145
          %v1149 = vadd.f32 %v1142, %v1146
          %v1150 = vadd.f32 %v1143, %v1147
          %v1151 = vstv %s467
          %v1152 = vmul.f32 %v943, %v1151
          %v1153 = vmul.f32 %v945, %v1151
          %v1154 = vmul.f32 %v947, %v1151
          %v1155 = vadd.f32 %v1148, %v1152
          %v1156 = vadd.f32 %v1149, %v1153
          %v1157 = vadd.f32 %v1150, %v1154
          %vm1161 = vcmask 1044480
          %v1162 = vrot.slane %v1155, 3
          %v1163 = vrot.slane %v1156, 3
          %v1164 = vsel %vm1161, %v1162, %v1163
          %v1165 = vrot.slane %v1157, 3
          %v1166 = vsel %vm1161, %v1163, %v1165
          %v1169 = vadd.f32 %v1050, %v1164
          %v1170 = vadd.f32 %v1051, %v1166
          %v1171 = vstv %s468
          %v1172 = vmul.f32 %v913, %v1171
          %v1173 = vmul.f32 %v915, %v1171
          %v1174 = vmul.f32 %v917, %v1171
          %v1175 = vstv %s469
          %v1176 = vmul.f32 %v919, %v1175
          %v1177 = vmul.f32 %v921, %v1175
          %v1178 = vmul.f32 %v923, %v1175
          %v1179 = vadd.f32 %v1172, %v1176
          %v1180 = vadd.f32 %v1173, %v1177
          %v1181 = vadd.f32 %v1174, %v1178
          %v1182 = vstv %s470
          %v1183 = vmul.f32 %v925, %v1182
          %v1184 = vmul.f32 %v927, %v1182
          %v1185 = vmul.f32 %v929, %v1182
          %v1186 = vadd.f32 %v1179, %v1183
          %v1187 = vadd.f32 %v1180, %v1184
          %v1188 = vadd.f32 %v1181, %v1185
          %v1189 = vstv %s471
          %v1190 = vmul.f32 %v909, %v1189
          %v1191 = vmul.f32 %v910, %v1189
          %v1192 = vmul.f32 %v911, %v1189
          %v1193 = vadd.f32 %v1186, %v1190
          %v1194 = vadd.f32 %v1187, %v1191
          %v1195 = vadd.f32 %v1188, %v1192
          %v1196 = vstv %s472
          %v1197 = vmul.f32 %v931, %v1196
          %v1198 = vmul.f32 %v933, %v1196
          %v1199 = vmul.f32 %v935, %v1196
          %v1200 = vadd.f32 %v1193, %v1197
          %v1201 = vadd.f32 %v1194, %v1198
          %v1202 = vadd.f32 %v1195, %v1199
          %v1203 = vstv %s473
          %v1204 = vmul.f32 %v937, %v1203
          %v1205 = vmul.f32 %v939, %v1203
          %v1206 = vmul.f32 %v941, %v1203
          %v1207 = vadd.f32 %v1200, %v1204
          %v1208 = vadd.f32 %v1201, %v1205
          %v1209 = vadd.f32 %v1202, %v1206
          %v1210 = vstv %s474
          %v1211 = vmul.f32 %v943, %v1210
          %v1212 = vmul.f32 %v945, %v1210
          %v1213 = vmul.f32 %v947, %v1210
          %v1214 = vadd.f32 %v1207, %v1211
          %v1215 = vadd.f32 %v1208, %v1212
          %v1216 = vadd.f32 %v1209, %v1213
          %v1220 = vrot.slane %v1214, 3
          %v1221 = vrot.slane %v1215, 3
          %v1222 = vsel %vm1161, %v1220, %v1221
          %v1223 = vrot.slane %v1216, 3
          %v1224 = vsel %vm1161, %v1221, %v1223
          %v1228 = vadd.f32 %v1109, %v1222
          %v1229 = vadd.f32 %v1110, %v1224
          %v1230 = vadd.f32 %v1111, %v1223
          %v1231 = vstv %s475
          %v1232 = vmul.f32 %v913, %v1231
          %v1233 = vmul.f32 %v915, %v1231
          %v1234 = vmul.f32 %v917, %v1231
          %v1235 = vstv %s476
          %v1236 = vmul.f32 %v919, %v1235
          %v1237 = vmul.f32 %v921, %v1235
          %v1238 = vmul.f32 %v923, %v1235
          %v1239 = vadd.f32 %v1232, %v1236
          %v1240 = vadd.f32 %v1233, %v1237
          %v1241 = vadd.f32 %v1234, %v1238
          %v1242 = vstv %s477
          %v1243 = vmul.f32 %v925, %v1242
          %v1244 = vmul.f32 %v927, %v1242
          %v1245 = vmul.f32 %v929, %v1242
          %v1246 = vadd.f32 %v1239, %v1243
          %v1247 = vadd.f32 %v1240, %v1244
          %v1248 = vadd.f32 %v1241, %v1245
          %v1249 = vstv %s478
          %v1250 = vmul.f32 %v909, %v1249
          %v1251 = vmul.f32 %v910, %v1249
          %v1252 = vmul.f32 %v911, %v1249
          %v1253 = vadd.f32 %v1246, %v1250
          %v1254 = vadd.f32 %v1247, %v1251
          %v1255 = vadd.f32 %v1248, %v1252
          %v1256 = vstv %s479
          %v1257 = vmul.f32 %v931, %v1256
          %v1258 = vmul.f32 %v933, %v1256
          %v1259 = vmul.f32 %v935, %v1256
          %v1260 = vadd.f32 %v1253, %v1257
          %v1261 = vadd.f32 %v1254, %v1258
          %v1262 = vadd.f32 %v1255, %v1259
          %v1263 = vstv %s480
          %v1264 = vmul.f32 %v937, %v1263
          %v1265 = vmul.f32 %v939, %v1263
          %v1266 = vmul.f32 %v941, %v1263
          %v1267 = vadd.f32 %v1260, %v1264
          %v1268 = vadd.f32 %v1261, %v1265
          %v1269 = vadd.f32 %v1262, %v1266
          %v1270 = vstv %s481
          %v1271 = vmul.f32 %v943, %v1270
          %v1272 = vmul.f32 %v945, %v1270
          %v1273 = vmul.f32 %v947, %v1270
          %v1274 = vadd.f32 %v1267, %v1271
          %v1275 = vadd.f32 %v1268, %v1272
          %v1276 = vadd.f32 %v1269, %v1273
          %vm1280 = vcmask 1042432
          %v1281 = vrot.slane %v1274, 5
          %v1282 = vrot.slane %v1275, 5
          %v1283 = vsel %vm1280, %v1281, %v1282
          %v1284 = vrot.slane %v1276, 5
          %v1285 = vsel %vm1280, %v1282, %v1284
          %v1288 = vadd.f32 %v1169, %v1283
          %v1289 = vadd.f32 %v1170, %v1285
          %v1290 = vstv %s482
          %v1291 = vmul.f32 %v913, %v1290
          %v1292 = vmul.f32 %v915, %v1290
          %v1293 = vmul.f32 %v917, %v1290
          %v1294 = vstv %s483
          %v1295 = vmul.f32 %v919, %v1294
          %v1296 = vmul.f32 %v921, %v1294
          %v1297 = vmul.f32 %v923, %v1294
          %v1298 = vadd.f32 %v1291, %v1295
          %v1299 = vadd.f32 %v1292, %v1296
          %v1300 = vadd.f32 %v1293, %v1297
          %v1301 = vstv %s484
          %v1302 = vmul.f32 %v925, %v1301
          %v1303 = vmul.f32 %v927, %v1301
          %v1304 = vmul.f32 %v929, %v1301
          %v1305 = vadd.f32 %v1298, %v1302
          %v1306 = vadd.f32 %v1299, %v1303
          %v1307 = vadd.f32 %v1300, %v1304
          %v1308 = vstv %s485
          %v1309 = vmul.f32 %v909, %v1308
          %v1310 = vmul.f32 %v910, %v1308
          %v1311 = vmul.f32 %v911, %v1308
          %v1312 = vadd.f32 %v1305, %v1309
          %v1313 = vadd.f32 %v1306, %v1310
          %v1314 = vadd.f32 %v1307, %v1311
          %v1315 = vstv %s486
          %v1316 = vmul.f32 %v931, %v1315
          %v1317 = vmul.f32 %v933, %v1315
          %v1318 = vmul.f32 %v935, %v1315
          %v1319 = vadd.f32 %v1312, %v1316
          %v1320 = vadd.f32 %v1313, %v1317
          %v1321 = vadd.f32 %v1314, %v1318
          %v1322 = vstv %s487
          %v1323 = vmul.f32 %v937, %v1322
          %v1324 = vmul.f32 %v939, %v1322
          %v1325 = vmul.f32 %v941, %v1322
          %v1326 = vadd.f32 %v1319, %v1323
          %v1327 = vadd.f32 %v1320, %v1324
          %v1328 = vadd.f32 %v1321, %v1325
          %v1329 = vstv %s488
          %v1330 = vmul.f32 %v943, %v1329
          %v1331 = vmul.f32 %v945, %v1329
          %v1332 = vmul.f32 %v947, %v1329
          %v1333 = vadd.f32 %v1326, %v1330
          %v1334 = vadd.f32 %v1327, %v1331
          %v1335 = vadd.f32 %v1328, %v1332
          %v1339 = vrot.slane %v1333, 5
          %v1340 = vrot.slane %v1334, 5
          %v1341 = vsel %vm1280, %v1339, %v1340
          %v1342 = vrot.slane %v1335, 5
          %v1343 = vsel %vm1280, %v1340, %v1342
          %v1347 = vadd.f32 %v1228, %v1341
          %v1348 = vadd.f32 %v1229, %v1343
          %v1349 = vadd.f32 %v1230, %v1342
          %v1353 = vrot.slane %v1347, 1
          %v1354 = vrot.slane %v1348, 1
          %v1355 = vsel %vm1042, %v1353, %v1354
          %v1356 = vrot.slane %v1349, 1
          %v1357 = vsel %vm1042, %v1354, %v1356
          %v1360 = vadd.f32 %v1288, %v1355
          %v1361 = vadd.f32 %v1289, %v1357
          %v1362 = vxor.u32 %v1360, 2147483648
          %v1363 = vxor.u32 %v1361, 2147483648
          %v1364 = vmul.f32 %v1362, 1.442695
          %v1365 = vpow.pop %v1364
          %v1366 = vmul.f32 %v1363, 1.442695
          %v1367 = vpow.pop %v1366
          %v1368 = vadd.f32 %v1365, 1.0
          %v1369 = vadd.f32 %v1367, 1.0
          %v1370 = vrcp.pop %v1368
          %v1371 = vmul.f32 1.0, %v1370
          %v1372 = vrcp.pop %v1369
          %v1373 = vmul.f32 1.0, %v1372
          %1374 = vst [vmem:[%s217] sm:$0xff] %v1371
          %1375 = vst [vmem:[%s217 + $0x8] sm:$0xff] %v1373
        $region48: #{tpu_custom_call.1} parent=31 // pred_fallthru
          _
        %s1376 = sand.u32 %s112, 1
        %s1377 = scalar_lea.sflag [#allocation7], %s1376
        %s1378 = sand.u32 %s112, 1
        %s1379 = smul.addr %s1378, 16
        %s1380 = scalar_lea.vmem [#allocation10], %s1379
        // Predicated region
        $region49: #{tpu_custom_call.1} parent=31 // pred_check
          %p1381 = pneg %p122
        $region50: #{tpu_custom_call.1} parent=31 // pred_check_branch
          %1383 = sbr.rel (%p1381) target = $region52
        $region51: #{tpu_custom_call.1} parent=31 // pred_region
          %s1385 = ssub.s32 256, 256
          %1386 = vsyncadd %s1377, %s1385
          %s1387 = smul.addr %s26, 2
          %s1388 = smul.addr %s1387, 128
          %s1389 = scalar_lea.hbm %s3, %s1388
          %s1390 = sshll.u32 %s1380, 4
          %s1391 = int_to_ptr.vmem [resolvable:$true] %s1390
          %1396 = dma.vmem_to_hbm [thread:$0]  %s1391, 256, %s1389, %s1377, 128, 128, 8
        $region52: #{tpu_custom_call.1} parent=31 // pred_fallthru
          _
      $region32: #{tpu_custom_call.1} parent=5 // pred_fallthru
        _
      %p1397 = scmp.le.s32.totalorder 2, %s17
      // Predicated region
      $region53: #{tpu_custom_call.1} parent=5 // pred_check
        %p1398 = pneg %p1397
      $region54: #{tpu_custom_call.1} parent=5 // pred_check_branch
        %1400 = sbr.rel (%p1398) target = $region56
      $region55: #{tpu_custom_call.1} parent=5 // pred_region
        %s1401 = ssub.s32 %s17, 2
        // Predicated region
        $region57: #{tpu_custom_call.1} parent=55 // pred_check
          %p1402 = pneg %p128
        $region58: #{tpu_custom_call.1} parent=55 // pred_check_branch
          %1404 = sbr.rel (%p1402) target = $region60
        $region59: #{tpu_custom_call.1} parent=55 // pred_region
          %s1405 = sand.u32 %s113, 1
          %s1406 = scalar_lea.sflag [#allocation7], %s1405
          %s1407 = sand.u32 %s113, 1
          %s1408 = smul.addr %s1407, 16
          %s1409 = scalar_lea.vmem [#allocation10], %s1408
          %1410 = dma.done %s1406, 256
        $region60: #{tpu_custom_call.1} parent=55 // pred_fallthru
          _
      $region56: #{tpu_custom_call.1} parent=5 // pred_fallthru
        _
    $region6: #{tpu_custom_call.1} parent=1 // loop_footer
      %s21 = sadd.s32 1, %s17
    $region7: #{tpu_custom_call.1} parent=1 // loop_footer_branch
      %16 = sbr.rel target = $region3
    $region8: #{tpu_custom_call.1} parent=1 // loop_exit
      _
    %1411 = vsyncpa [#allocation6], 1
    %s1412 = scalar_lea.sflag [#allocation6], 1
    %1413 = vsyncpa %s1412, 1
    %1414 = vsyncpa [#allocation7], 1
    %s1415 = scalar_lea.sflag [#allocation7], 1
    %1416 = vsyncpa %s1415, 1
    %1417 = vsyncpa [#allocation8], 1
    %s1418 = scalar_lea.sflag [#allocation8], 1
    %1419 = vsyncpa %s1418, 1

</llo_original>
